<compile_context>
chip_gen: v7x
topology: tpu7x:2x2x1
jax: 0.10.0
libtpu: 0.0.40
codegen_flags: <defaults>
</compile_context>

<pallas_src>
import functools

import jax
import jax.numpy as jnp
from jax.experimental import pallas as pl
from jax.experimental.pallas import tpu as pltpu

_LANES = 128
_CHUNK_ROWS = 8                      # one dense (8, 128) f32 vreg per channel per chunk
_UNROLL = 8                          # inner fori_loop unroll factor
_ROW_GRAN = _CHUNK_ROWS * _UNROLL    # spatial-tile row granularity (64 rows)


def _vmem_capacity_bytes():
    try:
        return int(pltpu.get_tpu_info().vmem_capacity_bytes)
    except Exception:
        return 64 << 20              # conservative fallback (v7x per-TensorCore VMEM)


def _pick_tile_rows(num_classes, x_itemsize, rows_per_split, max_tile_rows=None):
    """Largest row tile (multiple of _ROW_GRAN) within a generation-aware VMEM
    budget; prefers a single tile covering the whole per-split image."""
    cap = _vmem_capacity_bytes()
    budget = min(cap // 2, 64 << 20)            # ~64 MiB on v5e/v6e, ~32 MiB on v7x
    # double-buffered logits + double-buffered int32 labels per spatial row
    per_row = 2 * num_classes * _LANES * x_itemsize + 2 * _LANES * 4
    tr = budget // per_row
    if max_tile_rows is not None:
        tr = min(tr, max_tile_rows)
    tr = (tr // _ROW_GRAN) * _ROW_GRAN
    tr = max(_ROW_GRAN, min(tr, rows_per_split))
    return int(tr)


def _dice_stats_kernel(x_ref, t_ref, o_ref, *, num_classes, need_mask,
                       chunk_rows, unroll):
    """One (split, batch, spatial-tile) grid step.

    x_ref: (1, C, TR, 128)  logits tile (source dtype)
    t_ref: (1, 1, TR, 128)  int32 labels tile (pad positions hold -1)
    o_ref: (1, 1, 3*C*chunk_rows, 128) f32 per-(split,batch) partial sums,
           rows laid out as [stat(3)][channel(C)][sublane(chunk_rows)].
    """
    si = pl.program_id(2)

    @pl.when(si == 0)
    def _init():
        o_ref[...] = jnp.zeros_like(o_ref)

    tile_rows = x_ref.shape[2]
    n_chunks = tile_rows // chunk_rows

    def chunk_body(ci, carry):
        int_acc, psum_acc, ohsum_acc = carry
        row0 = pl.multiple_of(ci * chunk_rows, chunk_rows)
        lab = t_ref[0, 0, pl.ds(row0, chunk_rows), :]              # (8,128) int32
        xs = [x_ref[0, c, pl.ds(row0, chunk_rows), :].astype(jnp.float32)
              for c in range(num_classes)]
        # Channel softmax, fully register-resident, all vregs (8,128) dense.
        m = xs[0]
        for c in range(1, num_classes):
            m = jnp.maximum(m, xs[c])
        es = [jnp.exp(xc - m) for xc in xs]                        # EUP
        denom = es[0]
        for c in range(1, num_classes):
            denom = denom + es[c]
        r = pl.reciprocal(denom, approx=True)                      # EUP
        r = r * (2.0 - denom * r)                                  # Newton -> ~f32 exact
        if need_mask:
            # Pad positions carry label -1; zeroing r zeroes p for every stat.
            r = jnp.where(lab >= 0, r, 0.0)
        new_int, new_psum, new_ohsum = [], [], []
        for c in range(num_classes):
            p = es[c] * r
            oh = jnp.where(lab == c, 1.0, 0.0)                     # one-hot, no iota
            new_int.append(int_acc[c] + p * oh)
            new_psum.append(psum_acc[c] + p)
            new_ohsum.append(ohsum_acc[c] + oh)
        return tuple(new_int), tuple(new_psum), tuple(new_ohsum)

    zero = jnp.zeros((chunk_rows, _LANES), jnp.float32)
    init = (tuple(zero for _ in range(num_classes)),
            tuple(zero for _ in range(num_classes)),
            tuple(zero for _ in range(num_classes)))
    acc = jax.lax.fori_loop(0, n_chunks, chunk_body, init,
                            unroll=min(unroll, n_chunks))

    # Fold the tile's register accumulators into the tiny resident output block.
    for k, group in enumerate(acc):
        for c in range(num_classes):
            base = (k * num_classes + c) * chunk_rows
            o_ref[0, 0, pl.ds(base, chunk_rows), :] += group[c]


def _dice_stats(x, t, *, splits, tiles_per_split, tile_rows, need_mask):
    """x: (N, C, R_pad, 128) logits, t: (N, 1, R_pad, 128) int32 labels
    -> (splits, N, 3*C*8, 128) f32 partial sums."""
    n, c, r_pad, lanes = x.shape
    assert lanes == _LANES
    assert r_pad == splits * tiles_per_split * tile_rows
    out_rows = 3 * c * _CHUNK_ROWS

    def spatial_map(sp, b, si):
        return (b, 0, sp * tiles_per_split + si, 0)

    itemsize = jnp.dtype(x.dtype).itemsize
    tile_bytes = (2 * c * tile_rows * _LANES * itemsize       # double-buffered logits
                  + 2 * tile_rows * _LANES * 4                # double-buffered labels
                  + 2 * out_rows * _LANES * 4)                # resident stats block
    vmem_limit = int(max(32 << 20,
                         min(_vmem_capacity_bytes(), tile_bytes + (8 << 20))))

    kernel = functools.partial(
        _dice_stats_kernel, num_classes=c, need_mask=need_mask,
        chunk_rows=_CHUNK_ROWS, unroll=_UNROLL)

    return pl.pallas_call(
        kernel,
        out_shape=jax.ShapeDtypeStruct((splits, n, out_rows, _LANES), jnp.float32),
        grid_spec=pltpu.PrefetchScalarGridSpec(
            num_scalar_prefetch=0,
            grid=(splits, n, tiles_per_split),
            in_specs=[
                pl.BlockSpec((1, c, tile_rows, _LANES), spatial_map),
                pl.BlockSpec((1, 1, tile_rows, _LANES), spatial_map),
            ],
            out_specs=pl.BlockSpec((1, 1, out_rows, _LANES),
                                   lambda sp, b, si: (sp, b, 0, 0)),
        ),
        compiler_params=pltpu.CompilerParams(
            dimension_semantics=("parallel", "parallel", "arbitrary"),
            vmem_limit_bytes=vmem_limit),
    )(x, t)


def dice_loss(inputs, target, smooth=1.0, reduce="mean", detail=False,
              max_tile_rows=None):
    """JAX/Pallas equivalent of DiceLoss.forward.

    inputs: (N, C, H, W) float logits (kept in their source dtype)
    target: (N, H, W)    integer class labels in [0, C)
    """
    n, c, h, w = inputs.shape
    s = h * w

    x = inputs.reshape(n, c, s)
    t = target.reshape(n, 1, s).astype(jnp.int32)

    rows_needed = -(-s // _LANES)
    # Spatial split: feed both v7x TensorCores when the batch axis alone cannot
    # (batch of 1 / odd batch). It is just one extra (cheap) grid step elsewhere.
    splits = 2 if (n % 2 == 1 and rows_needed >= 2 * _ROW_GRAN) else 1
    rows_per_split = -(-rows_needed // splits)
    rows_per_split = -(-rows_per_split // _ROW_GRAN) * _ROW_GRAN
    tile_rows = _pick_tile_rows(c, jnp.dtype(x.dtype).itemsize, rows_per_split,
                                max_tile_rows)
    tiles_per_split = -(-rows_per_split // tile_rows)
    r_pad = splits * tiles_per_split * tile_rows
    s_pad = r_pad * _LANES
    need_mask = s_pad != s
    if need_mask:
        x = jnp.pad(x, ((0, 0), (0, 0), (0, s_pad - s)))
        # Pad labels with -1: the one-hot is zero there and the kernel masks p.
        t = jnp.pad(t, ((0, 0), (0, 0), (0, s_pad - s)), constant_values=-1)
    x = x.reshape(n, c, r_pad, _LANES)
    t = t.reshape(n, 1, r_pad, _LANES)

    # TODO(synk): on v5e, cast labels to int8 (valid for C < 128) to cut label
    # HBM traffic ~4x; kept int32 here for lowering simplicity.
    stats = _dice_stats(x, t, splits=splits, tiles_per_split=tiles_per_split,
                        tile_rows=tile_rows, need_mask=need_mask)

    # (splits, N, 3*C*8, 128) partial sums -> (N, 3, C); tiny, done in JAX glue.
    sums = stats.sum(axis=(0, -1)).reshape(n, 3, c, _CHUNK_ROWS).sum(axis=-1)
    intersection, isum, tsum = sums[:, 0], sums[:, 1], sums[:, 2]

    dice = (2.0 * intersection + smooth) / (isum + tsum + smooth)

    if detail:
        return c * 1.0 - dice.sum(axis=1)
    elif reduce == "mean":
        return (c * 1.0 - dice.sum(axis=1)).mean()
    elif reduce == "sum":
        return n - dice.sum()
    else:
        raise ValueError(f"unknown reduce={reduce!r}")


def _dice_loss_ref(inputs, target, smooth=1.0, reduce="mean", detail=False):
    """Pure-JAX reference mirroring the PyTorch forward exactly."""
    n, c, h, w = inputs.shape
    onehot = jax.nn.one_hot(target, c, axis=1, dtype=jnp.float32)
    p = jax.nn.softmax(inputs.astype(jnp.float32), axis=1)
    iflat = p.reshape(n, c, -1)
    tflat = onehot.reshape(n, c, -1)
    intersection = (iflat * tflat).sum(axis=2)
    dice = (2.0 * intersection + smooth) / (iflat.sum(axis=2) + tflat.sum(axis=2) + smooth)
    if detail:
        return c * 1.0 - dice.sum(axis=1)
    elif reduce == "mean":
        return (c * 1.0 - dice.sum(axis=1)).mean()
    else:
        return n - dice.sum()


if __name__ == "__main__":
    key = jax.random.PRNGKey(0)
    k1, k2 = jax.random.split(key)

    def check(inputs, target, rtol=1e-5, atol=1e-5, **kw):
        out = jax.block_until_ready(dice_loss(inputs, target, **kw))
        ref = _dice_loss_ref(inputs, target,
                             smooth=kw.get("smooth", 1.0),
                             reduce=kw.get("reduce", "mean"),
                             detail=kw.get("detail", False))
        assert jnp.allclose(out, ref, rtol=rtol, atol=atol), (kw, out, ref)

    # Canonical small shape (N, C, H, W) = (2, 4, 16, 16), all reduce modes.
    N, C, H, W = 2, 4, 16, 16
    x = jax.random.normal(k1, (N, C, H, W), dtype=jnp.float32)
    y = jax.random.randint(k2, (N, H, W), 0, C, dtype=jnp.int32)
    check(x, y, reduce="mean")
    check(x, y, reduce="sum")
    check(x, y, detail=True)

    # Ragged spatial extent (not a multiple of 128) -> pad + label-mask path.
    x2 = jax.random.normal(k1, (N, C, 10, 10), dtype=jnp.float32)
    y2 = jax.random.randint(k2, (N, 10, 10), 0, C, dtype=jnp.int32)
    check(x2, y2)

    # Batch of 1, larger image -> exercises the 2-way spatial split (v7x path).
    x3 = jax.random.normal(k1, (1, 4, 128, 128), dtype=jnp.float32)
    y3 = jax.random.randint(k2, (1, 128, 128), 0, 4, dtype=jnp.int32)
    check(x3, y3)

    # Multiple spatial tiles per split -> exercises cross-tile accumulation.
    x4 = jax.random.normal(k1, (2, 3, 128, 128), dtype=jnp.float32)
    y4 = jax.random.randint(k2, (2, 128, 128), 0, 3, dtype=jnp.int32)
    check(x4, y4, max_tile_rows=64)

    # bf16 logits (kernel casts per chunk; reference casts up front).
    check(x.astype(jnp.bfloat16), y, rtol=1e-4, atol=1e-4)

    print("KERNEL_OK")
</pallas_src>

<mosaic_0001>
module attributes {stable_mosaic.version = 11 : i64} {
  func.func @_dice_stats_kernel(%arg0: i32, %arg1: i32, %arg2: i32, %arg3: memref<1x4x64x128xf32, #tpu.memory_space<vmem>>, %arg4: memref<1x1x64x128xi32, #tpu.memory_space<vmem>>, %arg5: memref<1x1x96x128xf32, #tpu.memory_space<vmem>>) attributes {dimension_semantics = [#tpu.dimension_semantics<parallel>, #tpu.dimension_semantics<parallel>, #tpu.dimension_semantics<arbitrary>], iteration_bounds = array<i64: 1, 2, 1>, scalar_prefetch = 0 : i64, scratch_operands = 0 : i64, tpu.core_type = #tpu.core_type<tc>, window_params = [{transform_indices = @transform_0, window_bounds = array<i64: 1, 4, 64, 128>}, {transform_indices = @transform_1, window_bounds = array<i64: 1, 1, 64, 128>}, {transform_indices = @transform_2, window_bounds = array<i64: 1, 1, 96, 128>}]} {
    %c0_i32 = arith.constant 0 : i32
    %0 = arith.cmpi eq, %arg2, %c0_i32 : i32
    %1 = arith.extui %0 : i1 to i32
    %c0_i32_0 = arith.constant 0 : i32
    %2 = arith.cmpi ne, %1, %c0_i32_0 : i32
    scf.if %2 {
      %cst_331 = arith.constant 0.000000e+00 : f32
      %716 = vector.broadcast %cst_331 : f32 to vector<1x1x96x128xf32>
      %c0_332 = arith.constant 0 : index
      %c0_333 = arith.constant 0 : index
      %c0_334 = arith.constant 0 : index
      %c0_335 = arith.constant 0 : index
      %717 = vector.load %arg5[%c0_332, %c0_333, %c0_334, %c0_335] : memref<1x1x96x128xf32, #tpu.memory_space<vmem>>, vector<1x1x96x128xf32>
      tpu.vector_store %arg5[%c0_332, %c0_333, %c0_334, %c0_335], %716 {strides = array<i32>} : memref<1x1x96x128xf32, #tpu.memory_space<vmem>>, vector<1x1x96x128xf32>,
    } else {
    }
    %cst = arith.constant 0.000000e+00 : f32
    %3 = vector.broadcast %cst : f32 to vector<8x128xf32>
    %c0_i32_1 = arith.constant 0 : i32
    %c8_i32 = arith.constant 8 : i32
    %4 = arith.muli %c0_i32_1, %c8_i32 : i32
    %5 = tpu.assume_multiple %4, 8 : i32
    %c0 = arith.constant 0 : index
    %c0_2 = arith.constant 0 : index
    %6 = arith.index_cast %5 : i32 to index
    %c0_3 = arith.constant 0 : index
    %7 = vector.load %arg4[%c0, %c0_2, %6, %c0_3] : memref<1x1x64x128xi32, #tpu.memory_space<vmem>>, vector<1x1x8x128xi32>
    %8 = vector.shape_cast %7 : vector<1x1x8x128xi32> to vector<8x128xi32>
    %c0_4 = arith.constant 0 : index
    %c0_5 = arith.constant 0 : index
    %9 = arith.index_cast %5 : i32 to index
    %c0_6 = arith.constant 0 : index
    %10 = vector.load %arg3[%c0_4, %c0_5, %9, %c0_6] : memref<1x4x64x128xf32, #tpu.memory_space<vmem>>, vector<1x1x8x128xf32>
    %11 = vector.shape_cast %10 : vector<1x1x8x128xf32> to vector<8x128xf32>
    %c0_7 = arith.constant 0 : index
    %c1 = arith.constant 1 : index
    %12 = arith.index_cast %5 : i32 to index
    %c0_8 = arith.constant 0 : index
    %13 = vector.load %arg3[%c0_7, %c1, %12, %c0_8] : memref<1x4x64x128xf32, #tpu.memory_space<vmem>>, vector<1x1x8x128xf32>
    %14 = vector.shape_cast %13 : vector<1x1x8x128xf32> to vector<8x128xf32>
    %c0_9 = arith.constant 0 : index
    %c2 = arith.constant 2 : index
    %15 = arith.index_cast %5 : i32 to index
    %c0_10 = arith.constant 0 : index
    %16 = vector.load %arg3[%c0_9, %c2, %15, %c0_10] : memref<1x4x64x128xf32, #tpu.memory_space<vmem>>, vector<1x1x8x128xf32>
    %17 = vector.shape_cast %16 : vector<1x1x8x128xf32> to vector<8x128xf32>
    %c0_11 = arith.constant 0 : index
    %c3 = arith.constant 3 : index
    %18 = arith.index_cast %5 : i32 to index
    %c0_12 = arith.constant 0 : index
    %19 = vector.load %arg3[%c0_11, %c3, %18, %c0_12] : memref<1x4x64x128xf32, #tpu.memory_space<vmem>>, vector<1x1x8x128xf32>
    %20 = vector.shape_cast %19 : vector<1x1x8x128xf32> to vector<8x128xf32>
    %21 = arith.maximumf %11, %14 : vector<8x128xf32>
    %22 = arith.maximumf %21, %17 : vector<8x128xf32>
    %23 = arith.maximumf %22, %20 : vector<8x128xf32>
    %24 = arith.subf %11, %23 : vector<8x128xf32>
    %25 = math.exp %24 : vector<8x128xf32>
    %26 = arith.subf %14, %23 : vector<8x128xf32>
    %27 = math.exp %26 : vector<8x128xf32>
    %28 = arith.subf %17, %23 : vector<8x128xf32>
    %29 = math.exp %28 : vector<8x128xf32>
    %30 = arith.subf %20, %23 : vector<8x128xf32>
    %31 = math.exp %30 : vector<8x128xf32>
    %32 = arith.addf %25, %27 : vector<8x128xf32>
    %33 = arith.addf %32, %29 : vector<8x128xf32>
    %34 = arith.addf %33, %31 : vector<8x128xf32>
    %35 = tpu.reciprocal %34 {approx = true} : vector<8x128xf32> -> vector<8x128xf32>
    %36 = arith.mulf %34, %35 : vector<8x128xf32>
    %cst_13 = arith.constant 2.000000e+00 : f32
    %37 = vector.broadcast %cst_13 : f32 to vector<8x128xf32>
    %38 = arith.subf %37, %36 : vector<8x128xf32>
    %39 = arith.mulf %35, %38 : vector<8x128xf32>
    %c0_i32_14 = arith.constant 0 : i32
    %40 = vector.broadcast %c0_i32_14 : i32 to vector<8x128xi32>
    %41 = arith.cmpi sge, %8, %40 : vector<8x128xi32>
    %cst_15 = arith.constant 0.000000e+00 : f32
    %42 = vector.broadcast %cst_15 : f32 to vector<8x128xf32>
    %43 = arith.select %41, %39, %42 : vector<8x128xi1>, vector<8x128xf32>
    %44 = arith.mulf %25, %43 : vector<8x128xf32>
    %c0_i32_16 = arith.constant 0 : i32
    %45 = vector.broadcast %c0_i32_16 : i32 to vector<8x128xi32>
    %46 = arith.cmpi eq, %8, %45 : vector<8x128xi32>
    %cst_17 = arith.constant 1.000000e+00 : f32
    %cst_18 = arith.constant 0.000000e+00 : f32
    %47 = vector.broadcast %cst_17 : f32 to vector<8x128xf32>
    %48 = vector.broadcast %cst_18 : f32 to vector<8x128xf32>
    %49 = arith.select %46, %47, %48 : vector<8x128xi1>, vector<8x128xf32>
    %50 = arith.mulf %44, %49 : vector<8x128xf32>
    %51 = arith.addf %3, %50 : vector<8x128xf32>
    %52 = arith.addf %3, %44 : vector<8x128xf32>
    %53 = arith.addf %3, %49 : vector<8x128xf32>
    %54 = arith.mulf %27, %43 : vector<8x128xf32>
    %c1_i32 = arith.constant 1 : i32
    %55 = vector.broadcast %c1_i32 : i32 to vector<8x128xi32>
    %56 = arith.cmpi eq, %8, %55 : vector<8x128xi32>
    %cst_19 = arith.constant 1.000000e+00 : f32
    %cst_20 = arith.constant 0.000000e+00 : f32
    %57 = vector.broadcast %cst_19 : f32 to vector<8x128xf32>
    %58 = vector.broadcast %cst_20 : f32 to vector<8x128xf32>
    %59 = arith.select %56, %57, %58 : vector<8x128xi1>, vector<8x128xf32>
    %60 = arith.mulf %54, %59 : vector<8x128xf32>
    %61 = arith.addf %3, %60 : vector<8x128xf32>
    %62 = arith.addf %3, %54 : vector<8x128xf32>
    %63 = arith.addf %3, %59 : vector<8x128xf32>
    %64 = arith.mulf %29, %43 : vector<8x128xf32>
    %c2_i32 = arith.constant 2 : i32
    %65 = vector.broadcast %c2_i32 : i32 to vector<8x128xi32>
    %66 = arith.cmpi eq, %8, %65 : vector<8x128xi32>
    %cst_21 = arith.constant 1.000000e+00 : f32
    %cst_22 = arith.constant 0.000000e+00 : f32
    %67 = vector.broadcast %cst_21 : f32 to vector<8x128xf32>
    %68 = vector.broadcast %cst_22 : f32 to vector<8x128xf32>
    %69 = arith.select %66, %67, %68 : vector<8x128xi1>, vector<8x128xf32>
    %70 = arith.mulf %64, %69 : vector<8x128xf32>
    %71 = arith.addf %3, %70 : vector<8x128xf32>
    %72 = arith.addf %3, %64 : vector<8x128xf32>
    %73 = arith.addf %3, %69 : vector<8x128xf32>
    %74 = arith.mulf %31, %43 : vector<8x128xf32>
    %c3_i32 = arith.constant 3 : i32
    %75 = vector.broadcast %c3_i32 : i32 to vector<8x128xi32>
    %76 = arith.cmpi eq, %8, %75 : vector<8x128xi32>
    %cst_23 = arith.constant 1.000000e+00 : f32
    %cst_24 = arith.constant 0.000000e+00 : f32
    %77 = vector.broadcast %cst_23 : f32 to vector<8x128xf32>
    %78 = vector.broadcast %cst_24 : f32 to vector<8x128xf32>
    %79 = arith.select %76, %77, %78 : vector<8x128xi1>, vector<8x128xf32>
    %80 = arith.mulf %74, %79 : vector<8x128xf32>
    %81 = arith.addf %3, %80 : vector<8x128xf32>
    %82 = arith.addf %3, %74 : vector<8x128xf32>
    %83 = arith.addf %3, %79 : vector<8x128xf32>
    %c1_i32_25 = arith.constant 1 : i32
    %c8_i32_26 = arith.constant 8 : i32
    %84 = arith.muli %c1_i32_25, %c8_i32_26 : i32
    %85 = tpu.assume_multiple %84, 8 : i32
    %c0_27 = arith.constant 0 : index
    %c0_28 = arith.constant 0 : index
    %86 = arith.index_cast %85 : i32 to index
    %c0_29 = arith.constant 0 : index
    %87 = vector.load %arg4[%c0_27, %c0_28, %86, %c0_29] : memref<1x1x64x128xi32, #tpu.memory_space<vmem>>, vector<1x1x8x128xi32>
    %88 = vector.shape_cast %87 : vector<1x1x8x128xi32> to vector<8x128xi32>
    %c0_30 = arith.constant 0 : index
    %c0_31 = arith.constant 0 : index
    %89 = arith.index_cast %85 : i32 to index
    %c0_32 = arith.constant 0 : index
    %90 = vector.load %arg3[%c0_30, %c0_31, %89, %c0_32] : memref<1x4x64x128xf32, #tpu.memory_space<vmem>>, vector<1x1x8x128xf32>
    %91 = vector.shape_cast %90 : vector<1x1x8x128xf32> to vector<8x128xf32>
    %c0_33 = arith.constant 0 : index
    %c1_34 = arith.constant 1 : index
    %92 = arith.index_cast %85 : i32 to index
    %c0_35 = arith.constant 0 : index
    %93 = vector.load %arg3[%c0_33, %c1_34, %92, %c0_35] : memref<1x4x64x128xf32, #tpu.memory_space<vmem>>, vector<1x1x8x128xf32>
    %94 = vector.shape_cast %93 : vector<1x1x8x128xf32> to vector<8x128xf32>
    %c0_36 = arith.constant 0 : index
    %c2_37 = arith.constant 2 : index
    %95 = arith.index_cast %85 : i32 to index
    %c0_38 = arith.constant 0 : index
    %96 = vector.load %arg3[%c0_36, %c2_37, %95, %c0_38] : memref<1x4x64x128xf32, #tpu.memory_space<vmem>>, vector<1x1x8x128xf32>
    %97 = vector.shape_cast %96 : vector<1x1x8x128xf32> to vector<8x128xf32>
    %c0_39 = arith.constant 0 : index
    %c3_40 = arith.constant 3 : index
    %98 = arith.index_cast %85 : i32 to index
    %c0_41 = arith.constant 0 : index
    %99 = vector.load %arg3[%c0_39, %c3_40, %98, %c0_41] : memref<1x4x64x128xf32, #tpu.memory_space<vmem>>, vector<1x1x8x128xf32>
    %100 = vector.shape_cast %99 : vector<1x1x8x128xf32> to vector<8x128xf32>
    %101 = arith.maximumf %91, %94 : vector<8x128xf32>
    %102 = arith.maximumf %101, %97 : vector<8x128xf32>
    %103 = arith.maximumf %102, %100 : vector<8x128xf32>
    %104 = arith.subf %91, %103 : vector<8x128xf32>
    %105 = math.exp %104 : vector<8x128xf32>
    %106 = arith.subf %94, %103 : vector<8x128xf32>
    %107 = math.exp %106 : vector<8x128xf32>
    %108 = arith.subf %97, %103 : vector<8x128xf32>
    %109 = math.exp %108 : vector<8x128xf32>
    %110 = arith.subf %100, %103 : vector<8x128xf32>
    %111 = math.exp %110 : vector<8x128xf32>
    %112 = arith.addf %105, %107 : vector<8x128xf32>
    %113 = arith.addf %112, %109 : vector<8x128xf32>
    %114 = arith.addf %113, %111 : vector<8x128xf32>
    %115 = tpu.reciprocal %114 {approx = true} : vector<8x128xf32> -> vector<8x128xf32>
    %116 = arith.mulf %114, %115 : vector<8x128xf32>
    %cst_42 = arith.constant 2.000000e+00 : f32
    %117 = vector.broadcast %cst_42 : f32 to vector<8x128xf32>
    %118 = arith.subf %117, %116 : vector<8x128xf32>
    %119 = arith.mulf %115, %118 : vector<8x128xf32>
    %c0_i32_43 = arith.constant 0 : i32
    %120 = vector.broadcast %c0_i32_43 : i32 to vector<8x128xi32>
    %121 = arith.cmpi sge, %88, %120 : vector<8x128xi32>
    %cst_44 = arith.constant 0.000000e+00 : f32
    %122 = vector.broadcast %cst_44 : f32 to vector<8x128xf32>
    %123 = arith.select %121, %119, %122 : vector<8x128xi1>, vector<8x128xf32>
    %124 = arith.mulf %105, %123 : vector<8x128xf32>
    %c0_i32_45 = arith.constant 0 : i32
    %125 = vector.broadcast %c0_i32_45 : i32 to vector<8x128xi32>
    %126 = arith.cmpi eq, %88, %125 : vector<8x128xi32>
    %cst_46 = arith.constant 1.000000e+00 : f32
    %cst_47 = arith.constant 0.000000e+00 : f32
    %127 = vector.broadcast %cst_46 : f32 to vector<8x128xf32>
    %128 = vector.broadcast %cst_47 : f32 to vector<8x128xf32>
    %129 = arith.select %126, %127, %128 : vector<8x128xi1>, vector<8x128xf32>
    %130 = arith.mulf %124, %129 : vector<8x128xf32>
    %131 = arith.addf %51, %130 : vector<8x128xf32>
    %132 = arith.addf %52, %124 : vector<8x128xf32>
    %133 = arith.addf %53, %129 : vector<8x128xf32>
    %134 = arith.mulf %107, %123 : vector<8x128xf32>
    %c1_i32_48 = arith.constant 1 : i32
    %135 = vector.broadcast %c1_i32_48 : i32 to vector<8x128xi32>
    %136 = arith.cmpi eq, %88, %135 : vector<8x128xi32>
    %cst_49 = arith.constant 1.000000e+00 : f32
    %cst_50 = arith.constant 0.000000e+00 : f32
    %137 = vector.broadcast %cst_49 : f32 to vector<8x128xf32>
    %138 = vector.broadcast %cst_50 : f32 to vector<8x128xf32>
    %139 = arith.select %136, %137, %138 : vector<8x128xi1>, vector<8x128xf32>
    %140 = arith.mulf %134, %139 : vector<8x128xf32>
    %141 = arith.addf %61, %140 : vector<8x128xf32>
    %142 = arith.addf %62, %134 : vector<8x128xf32>
    %143 = arith.addf %63, %139 : vector<8x128xf32>
    %144 = arith.mulf %109, %123 : vector<8x128xf32>
    %c2_i32_51 = arith.constant 2 : i32
    %145 = vector.broadcast %c2_i32_51 : i32 to vector<8x128xi32>
    %146 = arith.cmpi eq, %88, %145 : vector<8x128xi32>
    %cst_52 = arith.constant 1.000000e+00 : f32
    %cst_53 = arith.constant 0.000000e+00 : f32
    %147 = vector.broadcast %cst_52 : f32 to vector<8x128xf32>
    %148 = vector.broadcast %cst_53 : f32 to vector<8x128xf32>
    %149 = arith.select %146, %147, %148 : vector<8x128xi1>, vector<8x128xf32>
    %150 = arith.mulf %144, %149 : vector<8x128xf32>
    %151 = arith.addf %71, %150 : vector<8x128xf32>
    %152 = arith.addf %72, %144 : vector<8x128xf32>
    %153 = arith.addf %73, %149 : vector<8x128xf32>
    %154 = arith.mulf %111, %123 : vector<8x128xf32>
    %c3_i32_54 = arith.constant 3 : i32
    %155 = vector.broadcast %c3_i32_54 : i32 to vector<8x128xi32>
    %156 = arith.cmpi eq, %88, %155 : vector<8x128xi32>
    %cst_55 = arith.constant 1.000000e+00 : f32
    %cst_56 = arith.constant 0.000000e+00 : f32
    %157 = vector.broadcast %cst_55 : f32 to vector<8x128xf32>
    %158 = vector.broadcast %cst_56 : f32 to vector<8x128xf32>
    %159 = arith.select %156, %157, %158 : vector<8x128xi1>, vector<8x128xf32>
    %160 = arith.mulf %154, %159 : vector<8x128xf32>
    %161 = arith.addf %81, %160 : vector<8x128xf32>
    %162 = arith.addf %82, %154 : vector<8x128xf32>
    %163 = arith.addf %83, %159 : vector<8x128xf32>
    %c2_i32_57 = arith.constant 2 : i32
    %c8_i32_58 = arith.constant 8 : i32
    %164 = arith.muli %c2_i32_57, %c8_i32_58 : i32
    %165 = tpu.assume_multiple %164, 8 : i32
    %c0_59 = arith.constant 0 : index
    %c0_60 = arith.constant 0 : index
    %166 = arith.index_cast %165 : i32 to index
    %c0_61 = arith.constant 0 : index
    %167 = vector.load %arg4[%c0_59, %c0_60, %166, %c0_61] : memref<1x1x64x128xi32, #tpu.memory_space<vmem>>, vector<1x1x8x128xi32>
    %168 = vector.shape_cast %167 : vector<1x1x8x128xi32> to vector<8x128xi32>
    %c0_62 = arith.constant 0 : index
    %c0_63 = arith.constant 0 : index
    %169 = arith.index_cast %165 : i32 to index
    %c0_64 = arith.constant 0 : index
    %170 = vector.load %arg3[%c0_62, %c0_63, %169, %c0_64] : memref<1x4x64x128xf32, #tpu.memory_space<vmem>>, vector<1x1x8x128xf32>
    %171 = vector.shape_cast %170 : vector<1x1x8x128xf32> to vector<8x128xf32>
    %c0_65 = arith.constant 0 : index
    %c1_66 = arith.constant 1 : index
    %172 = arith.index_cast %165 : i32 to index
    %c0_67 = arith.constant 0 : index
    %173 = vector.load %arg3[%c0_65, %c1_66, %172, %c0_67] : memref<1x4x64x128xf32, #tpu.memory_space<vmem>>, vector<1x1x8x128xf32>
    %174 = vector.shape_cast %173 : vector<1x1x8x128xf32> to vector<8x128xf32>
    %c0_68 = arith.constant 0 : index
    %c2_69 = arith.constant 2 : index
    %175 = arith.index_cast %165 : i32 to index
    %c0_70 = arith.constant 0 : index
    %176 = vector.load %arg3[%c0_68, %c2_69, %175, %c0_70] : memref<1x4x64x128xf32, #tpu.memory_space<vmem>>, vector<1x1x8x128xf32>
    %177 = vector.shape_cast %176 : vector<1x1x8x128xf32> to vector<8x128xf32>
    %c0_71 = arith.constant 0 : index
    %c3_72 = arith.constant 3 : index
    %178 = arith.index_cast %165 : i32 to index
    %c0_73 = arith.constant 0 : index
    %179 = vector.load %arg3[%c0_71, %c3_72, %178, %c0_73] : memref<1x4x64x128xf32, #tpu.memory_space<vmem>>, vector<1x1x8x128xf32>
    %180 = vector.shape_cast %179 : vector<1x1x8x128xf32> to vector<8x128xf32>
    %181 = arith.maximumf %171, %174 : vector<8x128xf32>
    %182 = arith.maximumf %181, %177 : vector<8x128xf32>
    %183 = arith.maximumf %182, %180 : vector<8x128xf32>
    %184 = arith.subf %171, %183 : vector<8x128xf32>
    %185 = math.exp %184 : vector<8x128xf32>
    %186 = arith.subf %174, %183 : vector<8x128xf32>
    %187 = math.exp %186 : vector<8x128xf32>
    %188 = arith.subf %177, %183 : vector<8x128xf32>
    %189 = math.exp %188 : vector<8x128xf32>
    %190 = arith.subf %180, %183 : vector<8x128xf32>
    %191 = math.exp %190 : vector<8x128xf32>
    %192 = arith.addf %185, %187 : vector<8x128xf32>
    %193 = arith.addf %192, %189 : vector<8x128xf32>
    %194 = arith.addf %193, %191 : vector<8x128xf32>
    %195 = tpu.reciprocal %194 {approx = true} : vector<8x128xf32> -> vector<8x128xf32>
    %196 = arith.mulf %194, %195 : vector<8x128xf32>
    %cst_74 = arith.constant 2.000000e+00 : f32
    %197 = vector.broadcast %cst_74 : f32 to vector<8x128xf32>
    %198 = arith.subf %197, %196 : vector<8x128xf32>
    %199 = arith.mulf %195, %198 : vector<8x128xf32>
    %c0_i32_75 = arith.constant 0 : i32
    %200 = vector.broadcast %c0_i32_75 : i32 to vector<8x128xi32>
    %201 = arith.cmpi sge, %168, %200 : vector<8x128xi32>
    %cst_76 = arith.constant 0.000000e+00 : f32
    %202 = vector.broadcast %cst_76 : f32 to vector<8x128xf32>
    %203 = arith.select %201, %199, %202 : vector<8x128xi1>, vector<8x128xf32>
    %204 = arith.mulf %185, %203 : vector<8x128xf32>
    %c0_i32_77 = arith.constant 0 : i32
    %205 = vector.broadcast %c0_i32_77 : i32 to vector<8x128xi32>
    %206 = arith.cmpi eq, %168, %205 : vector<8x128xi32>
    %cst_78 = arith.constant 1.000000e+00 : f32
    %cst_79 = arith.constant 0.000000e+00 : f32
    %207 = vector.broadcast %cst_78 : f32 to vector<8x128xf32>
    %208 = vector.broadcast %cst_79 : f32 to vector<8x128xf32>
    %209 = arith.select %206, %207, %208 : vector<8x128xi1>, vector<8x128xf32>
    %210 = arith.mulf %204, %209 : vector<8x128xf32>
    %211 = arith.addf %131, %210 : vector<8x128xf32>
    %212 = arith.addf %132, %204 : vector<8x128xf32>
    %213 = arith.addf %133, %209 : vector<8x128xf32>
    %214 = arith.mulf %187, %203 : vector<8x128xf32>
    %c1_i32_80 = arith.constant 1 : i32
    %215 = vector.broadcast %c1_i32_80 : i32 to vector<8x128xi32>
    %216 = arith.cmpi eq, %168, %215 : vector<8x128xi32>
    %cst_81 = arith.constant 1.000000e+00 : f32
    %cst_82 = arith.constant 0.000000e+00 : f32
    %217 = vector.broadcast %cst_81 : f32 to vector<8x128xf32>
    %218 = vector.broadcast %cst_82 : f32 to vector<8x128xf32>
    %219 = arith.select %216, %217, %218 : vector<8x128xi1>, vector<8x128xf32>
    %220 = arith.mulf %214, %219 : vector<8x128xf32>
    %221 = arith.addf %141, %220 : vector<8x128xf32>
    %222 = arith.addf %142, %214 : vector<8x128xf32>
    %223 = arith.addf %143, %219 : vector<8x128xf32>
    %224 = arith.mulf %189, %203 : vector<8x128xf32>
    %c2_i32_83 = arith.constant 2 : i32
    %225 = vector.broadcast %c2_i32_83 : i32 to vector<8x128xi32>
    %226 = arith.cmpi eq, %168, %225 : vector<8x128xi32>
    %cst_84 = arith.constant 1.000000e+00 : f32
    %cst_85 = arith.constant 0.000000e+00 : f32
    %227 = vector.broadcast %cst_84 : f32 to vector<8x128xf32>
    %228 = vector.broadcast %cst_85 : f32 to vector<8x128xf32>
    %229 = arith.select %226, %227, %228 : vector<8x128xi1>, vector<8x128xf32>
    %230 = arith.mulf %224, %229 : vector<8x128xf32>
    %231 = arith.addf %151, %230 : vector<8x128xf32>
    %232 = arith.addf %152, %224 : vector<8x128xf32>
    %233 = arith.addf %153, %229 : vector<8x128xf32>
    %234 = arith.mulf %191, %203 : vector<8x128xf32>
    %c3_i32_86 = arith.constant 3 : i32
    %235 = vector.broadcast %c3_i32_86 : i32 to vector<8x128xi32>
    %236 = arith.cmpi eq, %168, %235 : vector<8x128xi32>
    %cst_87 = arith.constant 1.000000e+00 : f32
    %cst_88 = arith.constant 0.000000e+00 : f32
    %237 = vector.broadcast %cst_87 : f32 to vector<8x128xf32>
    %238 = vector.broadcast %cst_88 : f32 to vector<8x128xf32>
    %239 = arith.select %236, %237, %238 : vector<8x128xi1>, vector<8x128xf32>
    %240 = arith.mulf %234, %239 : vector<8x128xf32>
    %241 = arith.addf %161, %240 : vector<8x128xf32>
    %242 = arith.addf %162, %234 : vector<8x128xf32>
    %243 = arith.addf %163, %239 : vector<8x128xf32>
    %c3_i32_89 = arith.constant 3 : i32
    %c8_i32_90 = arith.constant 8 : i32
    %244 = arith.muli %c3_i32_89, %c8_i32_90 : i32
    %245 = tpu.assume_multiple %244, 8 : i32
    %c0_91 = arith.constant 0 : index
    %c0_92 = arith.constant 0 : index
    %246 = arith.index_cast %245 : i32 to index
    %c0_93 = arith.constant 0 : index
    %247 = vector.load %arg4[%c0_91, %c0_92, %246, %c0_93] : memref<1x1x64x128xi32, #tpu.memory_space<vmem>>, vector<1x1x8x128xi32>
    %248 = vector.shape_cast %247 : vector<1x1x8x128xi32> to vector<8x128xi32>
    %c0_94 = arith.constant 0 : index
    %c0_95 = arith.constant 0 : index
    %249 = arith.index_cast %245 : i32 to index
    %c0_96 = arith.constant 0 : index
    %250 = vector.load %arg3[%c0_94, %c0_95, %249, %c0_96] : memref<1x4x64x128xf32, #tpu.memory_space<vmem>>, vector<1x1x8x128xf32>
    %251 = vector.shape_cast %250 : vector<1x1x8x128xf32> to vector<8x128xf32>
    %c0_97 = arith.constant 0 : index
    %c1_98 = arith.constant 1 : index
    %252 = arith.index_cast %245 : i32 to index
    %c0_99 = arith.constant 0 : index
    %253 = vector.load %arg3[%c0_97, %c1_98, %252, %c0_99] : memref<1x4x64x128xf32, #tpu.memory_space<vmem>>, vector<1x1x8x128xf32>
    %254 = vector.shape_cast %253 : vector<1x1x8x128xf32> to vector<8x128xf32>
    %c0_100 = arith.constant 0 : index
    %c2_101 = arith.constant 2 : index
    %255 = arith.index_cast %245 : i32 to index
    %c0_102 = arith.constant 0 : index
    %256 = vector.load %arg3[%c0_100, %c2_101, %255, %c0_102] : memref<1x4x64x128xf32, #tpu.memory_space<vmem>>, vector<1x1x8x128xf32>
    %257 = vector.shape_cast %256 : vector<1x1x8x128xf32> to vector<8x128xf32>
    %c0_103 = arith.constant 0 : index
    %c3_104 = arith.constant 3 : index
    %258 = arith.index_cast %245 : i32 to index
    %c0_105 = arith.constant 0 : index
    %259 = vector.load %arg3[%c0_103, %c3_104, %258, %c0_105] : memref<1x4x64x128xf32, #tpu.memory_space<vmem>>, vector<1x1x8x128xf32>
    %260 = vector.shape_cast %259 : vector<1x1x8x128xf32> to vector<8x128xf32>
    %261 = arith.maximumf %251, %254 : vector<8x128xf32>
    %262 = arith.maximumf %261, %257 : vector<8x128xf32>
    %263 = arith.maximumf %262, %260 : vector<8x128xf32>
    %264 = arith.subf %251, %263 : vector<8x128xf32>
    %265 = math.exp %264 : vector<8x128xf32>
    %266 = arith.subf %254, %263 : vector<8x128xf32>
    %267 = math.exp %266 : vector<8x128xf32>
    %268 = arith.subf %257, %263 : vector<8x128xf32>
    %269 = math.exp %268 : vector<8x128xf32>
    %270 = arith.subf %260, %263 : vector<8x128xf32>
    %271 = math.exp %270 : vector<8x128xf32>
    %272 = arith.addf %265, %267 : vector<8x128xf32>
    %273 = arith.addf %272, %269 : vector<8x128xf32>
    %274 = arith.addf %273, %271 : vector<8x128xf32>
    %275 = tpu.reciprocal %274 {approx = true} : vector<8x128xf32> -> vector<8x128xf32>
    %276 = arith.mulf %274, %275 : vector<8x128xf32>
    %cst_106 = arith.constant 2.000000e+00 : f32
    %277 = vector.broadcast %cst_106 : f32 to vector<8x128xf32>
    %278 = arith.subf %277, %276 : vector<8x128xf32>
    %279 = arith.mulf %275, %278 : vector<8x128xf32>
    %c0_i32_107 = arith.constant 0 : i32
    %280 = vector.broadcast %c0_i32_107 : i32 to vector<8x128xi32>
    %281 = arith.cmpi sge, %248, %280 : vector<8x128xi32>
    %cst_108 = arith.constant 0.000000e+00 : f32
    %282 = vector.broadcast %cst_108 : f32 to vector<8x128xf32>
    %283 = arith.select %281, %279, %282 : vector<8x128xi1>, vector<8x128xf32>
    %284 = arith.mulf %265, %283 : vector<8x128xf32>
    %c0_i32_109 = arith.constant 0 : i32
    %285 = vector.broadcast %c0_i32_109 : i32 to vector<8x128xi32>
    %286 = arith.cmpi eq, %248, %285 : vector<8x128xi32>
    %cst_110 = arith.constant 1.000000e+00 : f32
    %cst_111 = arith.constant 0.000000e+00 : f32
    %287 = vector.broadcast %cst_110 : f32 to vector<8x128xf32>
    %288 = vector.broadcast %cst_111 : f32 to vector<8x128xf32>
    %289 = arith.select %286, %287, %288 : vector<8x128xi1>, vector<8x128xf32>
    %290 = arith.mulf %284, %289 : vector<8x128xf32>
    %291 = arith.addf %211, %290 : vector<8x128xf32>
    %292 = arith.addf %212, %284 : vector<8x128xf32>
    %293 = arith.addf %213, %289 : vector<8x128xf32>
    %294 = arith.mulf %267, %283 : vector<8x128xf32>
    %c1_i32_112 = arith.constant 1 : i32
    %295 = vector.broadcast %c1_i32_112 : i32 to vector<8x128xi32>
    %296 = arith.cmpi eq, %248, %295 : vector<8x128xi32>
    %cst_113 = arith.constant 1.000000e+00 : f32
    %cst_114 = arith.constant 0.000000e+00 : f32
    %297 = vector.broadcast %cst_113 : f32 to vector<8x128xf32>
    %298 = vector.broadcast %cst_114 : f32 to vector<8x128xf32>
    %299 = arith.select %296, %297, %298 : vector<8x128xi1>, vector<8x128xf32>
    %300 = arith.mulf %294, %299 : vector<8x128xf32>
    %301 = arith.addf %221, %300 : vector<8x128xf32>
    %302 = arith.addf %222, %294 : vector<8x128xf32>
    %303 = arith.addf %223, %299 : vector<8x128xf32>
    %304 = arith.mulf %269, %283 : vector<8x128xf32>
    %c2_i32_115 = arith.constant 2 : i32
    %305 = vector.broadcast %c2_i32_115 : i32 to vector<8x128xi32>
    %306 = arith.cmpi eq, %248, %305 : vector<8x128xi32>
    %cst_116 = arith.constant 1.000000e+00 : f32
    %cst_117 = arith.constant 0.000000e+00 : f32
    %307 = vector.broadcast %cst_116 : f32 to vector<8x128xf32>
    %308 = vector.broadcast %cst_117 : f32 to vector<8x128xf32>
    %309 = arith.select %306, %307, %308 : vector<8x128xi1>, vector<8x128xf32>
    %310 = arith.mulf %304, %309 : vector<8x128xf32>
    %311 = arith.addf %231, %310 : vector<8x128xf32>
    %312 = arith.addf %232, %304 : vector<8x128xf32>
    %313 = arith.addf %233, %309 : vector<8x128xf32>
    %314 = arith.mulf %271, %283 : vector<8x128xf32>
    %c3_i32_118 = arith.constant 3 : i32
    %315 = vector.broadcast %c3_i32_118 : i32 to vector<8x128xi32>
    %316 = arith.cmpi eq, %248, %315 : vector<8x128xi32>
    %cst_119 = arith.constant 1.000000e+00 : f32
    %cst_120 = arith.constant 0.000000e+00 : f32
    %317 = vector.broadcast %cst_119 : f32 to vector<8x128xf32>
    %318 = vector.broadcast %cst_120 : f32 to vector<8x128xf32>
    %319 = arith.select %316, %317, %318 : vector<8x128xi1>, vector<8x128xf32>
    %320 = arith.mulf %314, %319 : vector<8x128xf32>
    %321 = arith.addf %241, %320 : vector<8x128xf32>
    %322 = arith.addf %242, %314 : vector<8x128xf32>
    %323 = arith.addf %243, %319 : vector<8x128xf32>
    %c4_i32 = arith.constant 4 : i32
    %c8_i32_121 = arith.constant 8 : i32
    %324 = arith.muli %c4_i32, %c8_i32_121 : i32
    %325 = tpu.assume_multiple %324, 8 : i32
    %c0_122 = arith.constant 0 : index
    %c0_123 = arith.constant 0 : index
    %326 = arith.index_cast %325 : i32 to index
    %c0_124 = arith.constant 0 : index
    %327 = vector.load %arg4[%c0_122, %c0_123, %326, %c0_124] : memref<1x1x64x128xi32, #tpu.memory_space<vmem>>, vector<1x1x8x128xi32>
    %328 = vector.shape_cast %327 : vector<1x1x8x128xi32> to vector<8x128xi32>
    %c0_125 = arith.constant 0 : index
    %c0_126 = arith.constant 0 : index
    %329 = arith.index_cast %325 : i32 to index
    %c0_127 = arith.constant 0 : index
    %330 = vector.load %arg3[%c0_125, %c0_126, %329, %c0_127] : memref<1x4x64x128xf32, #tpu.memory_space<vmem>>, vector<1x1x8x128xf32>
    %331 = vector.shape_cast %330 : vector<1x1x8x128xf32> to vector<8x128xf32>
    %c0_128 = arith.constant 0 : index
    %c1_129 = arith.constant 1 : index
    %332 = arith.index_cast %325 : i32 to index
    %c0_130 = arith.constant 0 : index
    %333 = vector.load %arg3[%c0_128, %c1_129, %332, %c0_130] : memref<1x4x64x128xf32, #tpu.memory_space<vmem>>, vector<1x1x8x128xf32>
    %334 = vector.shape_cast %333 : vector<1x1x8x128xf32> to vector<8x128xf32>
    %c0_131 = arith.constant 0 : index
    %c2_132 = arith.constant 2 : index
    %335 = arith.index_cast %325 : i32 to index
    %c0_133 = arith.constant 0 : index
    %336 = vector.load %arg3[%c0_131, %c2_132, %335, %c0_133] : memref<1x4x64x128xf32, #tpu.memory_space<vmem>>, vector<1x1x8x128xf32>
    %337 = vector.shape_cast %336 : vector<1x1x8x128xf32> to vector<8x128xf32>
    %c0_134 = arith.constant 0 : index
    %c3_135 = arith.constant 3 : index
    %338 = arith.index_cast %325 : i32 to index
    %c0_136 = arith.constant 0 : index
    %339 = vector.load %arg3[%c0_134, %c3_135, %338, %c0_136] : memref<1x4x64x128xf32, #tpu.memory_space<vmem>>, vector<1x1x8x128xf32>
    %340 = vector.shape_cast %339 : vector<1x1x8x128xf32> to vector<8x128xf32>
    %341 = arith.maximumf %331, %334 : vector<8x128xf32>
    %342 = arith.maximumf %341, %337 : vector<8x128xf32>
    %343 = arith.maximumf %342, %340 : vector<8x128xf32>
    %344 = arith.subf %331, %343 : vector<8x128xf32>
    %345 = math.exp %344 : vector<8x128xf32>
    %346 = arith.subf %334, %343 : vector<8x128xf32>
    %347 = math.exp %346 : vector<8x128xf32>
    %348 = arith.subf %337, %343 : vector<8x128xf32>
    %349 = math.exp %348 : vector<8x128xf32>
    %350 = arith.subf %340, %343 : vector<8x128xf32>
    %351 = math.exp %350 : vector<8x128xf32>
    %352 = arith.addf %345, %347 : vector<8x128xf32>
    %353 = arith.addf %352, %349 : vector<8x128xf32>
    %354 = arith.addf %353, %351 : vector<8x128xf32>
    %355 = tpu.reciprocal %354 {approx = true} : vector<8x128xf32> -> vector<8x128xf32>
    %356 = arith.mulf %354, %355 : vector<8x128xf32>
    %cst_137 = arith.constant 2.000000e+00 : f32
    %357 = vector.broadcast %cst_137 : f32 to vector<8x128xf32>
    %358 = arith.subf %357, %356 : vector<8x128xf32>
    %359 = arith.mulf %355, %358 : vector<8x128xf32>
    %c0_i32_138 = arith.constant 0 : i32
    %360 = vector.broadcast %c0_i32_138 : i32 to vector<8x128xi32>
    %361 = arith.cmpi sge, %328, %360 : vector<8x128xi32>
    %cst_139 = arith.constant 0.000000e+00 : f32
    %362 = vector.broadcast %cst_139 : f32 to vector<8x128xf32>
    %363 = arith.select %361, %359, %362 : vector<8x128xi1>, vector<8x128xf32>
    %364 = arith.mulf %345, %363 : vector<8x128xf32>
    %c0_i32_140 = arith.constant 0 : i32
    %365 = vector.broadcast %c0_i32_140 : i32 to vector<8x128xi32>
    %366 = arith.cmpi eq, %328, %365 : vector<8x128xi32>
    %cst_141 = arith.constant 1.000000e+00 : f32
    %cst_142 = arith.constant 0.000000e+00 : f32
    %367 = vector.broadcast %cst_141 : f32 to vector<8x128xf32>
    %368 = vector.broadcast %cst_142 : f32 to vector<8x128xf32>
    %369 = arith.select %366, %367, %368 : vector<8x128xi1>, vector<8x128xf32>
    %370 = arith.mulf %364, %369 : vector<8x128xf32>
    %371 = arith.addf %291, %370 : vector<8x128xf32>
    %372 = arith.addf %292, %364 : vector<8x128xf32>
    %373 = arith.addf %293, %369 : vector<8x128xf32>
    %374 = arith.mulf %347, %363 : vector<8x128xf32>
    %c1_i32_143 = arith.constant 1 : i32
    %375 = vector.broadcast %c1_i32_143 : i32 to vector<8x128xi32>
    %376 = arith.cmpi eq, %328, %375 : vector<8x128xi32>
    %cst_144 = arith.constant 1.000000e+00 : f32
    %cst_145 = arith.constant 0.000000e+00 : f32
    %377 = vector.broadcast %cst_144 : f32 to vector<8x128xf32>
    %378 = vector.broadcast %cst_145 : f32 to vector<8x128xf32>
    %379 = arith.select %376, %377, %378 : vector<8x128xi1>, vector<8x128xf32>
    %380 = arith.mulf %374, %379 : vector<8x128xf32>
    %381 = arith.addf %301, %380 : vector<8x128xf32>
    %382 = arith.addf %302, %374 : vector<8x128xf32>
    %383 = arith.addf %303, %379 : vector<8x128xf32>
    %384 = arith.mulf %349, %363 : vector<8x128xf32>
    %c2_i32_146 = arith.constant 2 : i32
    %385 = vector.broadcast %c2_i32_146 : i32 to vector<8x128xi32>
    %386 = arith.cmpi eq, %328, %385 : vector<8x128xi32>
    %cst_147 = arith.constant 1.000000e+00 : f32
    %cst_148 = arith.constant 0.000000e+00 : f32
    %387 = vector.broadcast %cst_147 : f32 to vector<8x128xf32>
    %388 = vector.broadcast %cst_148 : f32 to vector<8x128xf32>
    %389 = arith.select %386, %387, %388 : vector<8x128xi1>, vector<8x128xf32>
    %390 = arith.mulf %384, %389 : vector<8x128xf32>
    %391 = arith.addf %311, %390 : vector<8x128xf32>
    %392 = arith.addf %312, %384 : vector<8x128xf32>
    %393 = arith.addf %313, %389 : vector<8x128xf32>
    %394 = arith.mulf %351, %363 : vector<8x128xf32>
    %c3_i32_149 = arith.constant 3 : i32
    %395 = vector.broadcast %c3_i32_149 : i32 to vector<8x128xi32>
    %396 = arith.cmpi eq, %328, %395 : vector<8x128xi32>
    %cst_150 = arith.constant 1.000000e+00 : f32
    %cst_151 = arith.constant 0.000000e+00 : f32
    %397 = vector.broadcast %cst_150 : f32 to vector<8x128xf32>
    %398 = vector.broadcast %cst_151 : f32 to vector<8x128xf32>
    %399 = arith.select %396, %397, %398 : vector<8x128xi1>, vector<8x128xf32>
    %400 = arith.mulf %394, %399 : vector<8x128xf32>
    %401 = arith.addf %321, %400 : vector<8x128xf32>
    %402 = arith.addf %322, %394 : vector<8x128xf32>
    %403 = arith.addf %323, %399 : vector<8x128xf32>
    %c5_i32 = arith.constant 5 : i32
    %c8_i32_152 = arith.constant 8 : i32
    %404 = arith.muli %c5_i32, %c8_i32_152 : i32
    %405 = tpu.assume_multiple %404, 8 : i32
    %c0_153 = arith.constant 0 : index
    %c0_154 = arith.constant 0 : index
    %406 = arith.index_cast %405 : i32 to index
    %c0_155 = arith.constant 0 : index
    %407 = vector.load %arg4[%c0_153, %c0_154, %406, %c0_155] : memref<1x1x64x128xi32, #tpu.memory_space<vmem>>, vector<1x1x8x128xi32>
    %408 = vector.shape_cast %407 : vector<1x1x8x128xi32> to vector<8x128xi32>
    %c0_156 = arith.constant 0 : index
    %c0_157 = arith.constant 0 : index
    %409 = arith.index_cast %405 : i32 to index
    %c0_158 = arith.constant 0 : index
    %410 = vector.load %arg3[%c0_156, %c0_157, %409, %c0_158] : memref<1x4x64x128xf32, #tpu.memory_space<vmem>>, vector<1x1x8x128xf32>
    %411 = vector.shape_cast %410 : vector<1x1x8x128xf32> to vector<8x128xf32>
    %c0_159 = arith.constant 0 : index
    %c1_160 = arith.constant 1 : index
    %412 = arith.index_cast %405 : i32 to index
    %c0_161 = arith.constant 0 : index
    %413 = vector.load %arg3[%c0_159, %c1_160, %412, %c0_161] : memref<1x4x64x128xf32, #tpu.memory_space<vmem>>, vector<1x1x8x128xf32>
    %414 = vector.shape_cast %413 : vector<1x1x8x128xf32> to vector<8x128xf32>
    %c0_162 = arith.constant 0 : index
    %c2_163 = arith.constant 2 : index
    %415 = arith.index_cast %405 : i32 to index
    %c0_164 = arith.constant 0 : index
    %416 = vector.load %arg3[%c0_162, %c2_163, %415, %c0_164] : memref<1x4x64x128xf32, #tpu.memory_space<vmem>>, vector<1x1x8x128xf32>
    %417 = vector.shape_cast %416 : vector<1x1x8x128xf32> to vector<8x128xf32>
    %c0_165 = arith.constant 0 : index
    %c3_166 = arith.constant 3 : index
    %418 = arith.index_cast %405 : i32 to index
    %c0_167 = arith.constant 0 : index
    %419 = vector.load %arg3[%c0_165, %c3_166, %418, %c0_167] : memref<1x4x64x128xf32, #tpu.memory_space<vmem>>, vector<1x1x8x128xf32>
    %420 = vector.shape_cast %419 : vector<1x1x8x128xf32> to vector<8x128xf32>
    %421 = arith.maximumf %411, %414 : vector<8x128xf32>
    %422 = arith.maximumf %421, %417 : vector<8x128xf32>
    %423 = arith.maximumf %422, %420 : vector<8x128xf32>
    %424 = arith.subf %411, %423 : vector<8x128xf32>
    %425 = math.exp %424 : vector<8x128xf32>
    %426 = arith.subf %414, %423 : vector<8x128xf32>
    %427 = math.exp %426 : vector<8x128xf32>
    %428 = arith.subf %417, %423 : vector<8x128xf32>
    %429 = math.exp %428 : vector<8x128xf32>
    %430 = arith.subf %420, %423 : vector<8x128xf32>
    %431 = math.exp %430 : vector<8x128xf32>
    %432 = arith.addf %425, %427 : vector<8x128xf32>
    %433 = arith.addf %432, %429 : vector<8x128xf32>
    %434 = arith.addf %433, %431 : vector<8x128xf32>
    %435 = tpu.reciprocal %434 {approx = true} : vector<8x128xf32> -> vector<8x128xf32>
    %436 = arith.mulf %434, %435 : vector<8x128xf32>
    %cst_168 = arith.constant 2.000000e+00 : f32
    %437 = vector.broadcast %cst_168 : f32 to vector<8x128xf32>
    %438 = arith.subf %437, %436 : vector<8x128xf32>
    %439 = arith.mulf %435, %438 : vector<8x128xf32>
    %c0_i32_169 = arith.constant 0 : i32
    %440 = vector.broadcast %c0_i32_169 : i32 to vector<8x128xi32>
    %441 = arith.cmpi sge, %408, %440 : vector<8x128xi32>
    %cst_170 = arith.constant 0.000000e+00 : f32
    %442 = vector.broadcast %cst_170 : f32 to vector<8x128xf32>
    %443 = arith.select %441, %439, %442 : vector<8x128xi1>, vector<8x128xf32>
    %444 = arith.mulf %425, %443 : vector<8x128xf32>
    %c0_i32_171 = arith.constant 0 : i32
    %445 = vector.broadcast %c0_i32_171 : i32 to vector<8x128xi32>
    %446 = arith.cmpi eq, %408, %445 : vector<8x128xi32>
    %cst_172 = arith.constant 1.000000e+00 : f32
    %cst_173 = arith.constant 0.000000e+00 : f32
    %447 = vector.broadcast %cst_172 : f32 to vector<8x128xf32>
    %448 = vector.broadcast %cst_173 : f32 to vector<8x128xf32>
    %449 = arith.select %446, %447, %448 : vector<8x128xi1>, vector<8x128xf32>
    %450 = arith.mulf %444, %449 : vector<8x128xf32>
    %451 = arith.addf %371, %450 : vector<8x128xf32>
    %452 = arith.addf %372, %444 : vector<8x128xf32>
    %453 = arith.addf %373, %449 : vector<8x128xf32>
    %454 = arith.mulf %427, %443 : vector<8x128xf32>
    %c1_i32_174 = arith.constant 1 : i32
    %455 = vector.broadcast %c1_i32_174 : i32 to vector<8x128xi32>
    %456 = arith.cmpi eq, %408, %455 : vector<8x128xi32>
    %cst_175 = arith.constant 1.000000e+00 : f32
    %cst_176 = arith.constant 0.000000e+00 : f32
    %457 = vector.broadcast %cst_175 : f32 to vector<8x128xf32>
    %458 = vector.broadcast %cst_176 : f32 to vector<8x128xf32>
    %459 = arith.select %456, %457, %458 : vector<8x128xi1>, vector<8x128xf32>
    %460 = arith.mulf %454, %459 : vector<8x128xf32>
    %461 = arith.addf %381, %460 : vector<8x128xf32>
    %462 = arith.addf %382, %454 : vector<8x128xf32>
    %463 = arith.addf %383, %459 : vector<8x128xf32>
    %464 = arith.mulf %429, %443 : vector<8x128xf32>
    %c2_i32_177 = arith.constant 2 : i32
    %465 = vector.broadcast %c2_i32_177 : i32 to vector<8x128xi32>
    %466 = arith.cmpi eq, %408, %465 : vector<8x128xi32>
    %cst_178 = arith.constant 1.000000e+00 : f32
    %cst_179 = arith.constant 0.000000e+00 : f32
    %467 = vector.broadcast %cst_178 : f32 to vector<8x128xf32>
    %468 = vector.broadcast %cst_179 : f32 to vector<8x128xf32>
    %469 = arith.select %466, %467, %468 : vector<8x128xi1>, vector<8x128xf32>
    %470 = arith.mulf %464, %469 : vector<8x128xf32>
    %471 = arith.addf %391, %470 : vector<8x128xf32>
    %472 = arith.addf %392, %464 : vector<8x128xf32>
    %473 = arith.addf %393, %469 : vector<8x128xf32>
    %474 = arith.mulf %431, %443 : vector<8x128xf32>
    %c3_i32_180 = arith.constant 3 : i32
    %475 = vector.broadcast %c3_i32_180 : i32 to vector<8x128xi32>
    %476 = arith.cmpi eq, %408, %475 : vector<8x128xi32>
    %cst_181 = arith.constant 1.000000e+00 : f32
    %cst_182 = arith.constant 0.000000e+00 : f32
    %477 = vector.broadcast %cst_181 : f32 to vector<8x128xf32>
    %478 = vector.broadcast %cst_182 : f32 to vector<8x128xf32>
    %479 = arith.select %476, %477, %478 : vector<8x128xi1>, vector<8x128xf32>
    %480 = arith.mulf %474, %479 : vector<8x128xf32>
    %481 = arith.addf %401, %480 : vector<8x128xf32>
    %482 = arith.addf %402, %474 : vector<8x128xf32>
    %483 = arith.addf %403, %479 : vector<8x128xf32>
    %c6_i32 = arith.constant 6 : i32
    %c8_i32_183 = arith.constant 8 : i32
    %484 = arith.muli %c6_i32, %c8_i32_183 : i32
    %485 = tpu.assume_multiple %484, 8 : i32
    %c0_184 = arith.constant 0 : index
    %c0_185 = arith.constant 0 : index
    %486 = arith.index_cast %485 : i32 to index
    %c0_186 = arith.constant 0 : index
    %487 = vector.load %arg4[%c0_184, %c0_185, %486, %c0_186] : memref<1x1x64x128xi32, #tpu.memory_space<vmem>>, vector<1x1x8x128xi32>
    %488 = vector.shape_cast %487 : vector<1x1x8x128xi32> to vector<8x128xi32>
    %c0_187 = arith.constant 0 : index
    %c0_188 = arith.constant 0 : index
    %489 = arith.index_cast %485 : i32 to index
    %c0_189 = arith.constant 0 : index
    %490 = vector.load %arg3[%c0_187, %c0_188, %489, %c0_189] : memref<1x4x64x128xf32, #tpu.memory_space<vmem>>, vector<1x1x8x128xf32>
    %491 = vector.shape_cast %490 : vector<1x1x8x128xf32> to vector<8x128xf32>
    %c0_190 = arith.constant 0 : index
    %c1_191 = arith.constant 1 : index
    %492 = arith.index_cast %485 : i32 to index
    %c0_192 = arith.constant 0 : index
    %493 = vector.load %arg3[%c0_190, %c1_191, %492, %c0_192] : memref<1x4x64x128xf32, #tpu.memory_space<vmem>>, vector<1x1x8x128xf32>
    %494 = vector.shape_cast %493 : vector<1x1x8x128xf32> to vector<8x128xf32>
    %c0_193 = arith.constant 0 : index
    %c2_194 = arith.constant 2 : index
    %495 = arith.index_cast %485 : i32 to index
    %c0_195 = arith.constant 0 : index
    %496 = vector.load %arg3[%c0_193, %c2_194, %495, %c0_195] : memref<1x4x64x128xf32, #tpu.memory_space<vmem>>, vector<1x1x8x128xf32>
    %497 = vector.shape_cast %496 : vector<1x1x8x128xf32> to vector<8x128xf32>
    %c0_196 = arith.constant 0 : index
    %c3_197 = arith.constant 3 : index
    %498 = arith.index_cast %485 : i32 to index
    %c0_198 = arith.constant 0 : index
    %499 = vector.load %arg3[%c0_196, %c3_197, %498, %c0_198] : memref<1x4x64x128xf32, #tpu.memory_space<vmem>>, vector<1x1x8x128xf32>
    %500 = vector.shape_cast %499 : vector<1x1x8x128xf32> to vector<8x128xf32>
    %501 = arith.maximumf %491, %494 : vector<8x128xf32>
    %502 = arith.maximumf %501, %497 : vector<8x128xf32>
    %503 = arith.maximumf %502, %500 : vector<8x128xf32>
    %504 = arith.subf %491, %503 : vector<8x128xf32>
    %505 = math.exp %504 : vector<8x128xf32>
    %506 = arith.subf %494, %503 : vector<8x128xf32>
    %507 = math.exp %506 : vector<8x128xf32>
    %508 = arith.subf %497, %503 : vector<8x128xf32>
    %509 = math.exp %508 : vector<8x128xf32>
    %510 = arith.subf %500, %503 : vector<8x128xf32>
    %511 = math.exp %510 : vector<8x128xf32>
    %512 = arith.addf %505, %507 : vector<8x128xf32>
    %513 = arith.addf %512, %509 : vector<8x128xf32>
    %514 = arith.addf %513, %511 : vector<8x128xf32>
    %515 = tpu.reciprocal %514 {approx = true} : vector<8x128xf32> -> vector<8x128xf32>
    %516 = arith.mulf %514, %515 : vector<8x128xf32>
    %cst_199 = arith.constant 2.000000e+00 : f32
    %517 = vector.broadcast %cst_199 : f32 to vector<8x128xf32>
    %518 = arith.subf %517, %516 : vector<8x128xf32>
    %519 = arith.mulf %515, %518 : vector<8x128xf32>
    %c0_i32_200 = arith.constant 0 : i32
    %520 = vector.broadcast %c0_i32_200 : i32 to vector<8x128xi32>
    %521 = arith.cmpi sge, %488, %520 : vector<8x128xi32>
    %cst_201 = arith.constant 0.000000e+00 : f32
    %522 = vector.broadcast %cst_201 : f32 to vector<8x128xf32>
    %523 = arith.select %521, %519, %522 : vector<8x128xi1>, vector<8x128xf32>
    %524 = arith.mulf %505, %523 : vector<8x128xf32>
    %c0_i32_202 = arith.constant 0 : i32
    %525 = vector.broadcast %c0_i32_202 : i32 to vector<8x128xi32>
    %526 = arith.cmpi eq, %488, %525 : vector<8x128xi32>
    %cst_203 = arith.constant 1.000000e+00 : f32
    %cst_204 = arith.constant 0.000000e+00 : f32
    %527 = vector.broadcast %cst_203 : f32 to vector<8x128xf32>
    %528 = vector.broadcast %cst_204 : f32 to vector<8x128xf32>
    %529 = arith.select %526, %527, %528 : vector<8x128xi1>, vector<8x128xf32>
    %530 = arith.mulf %524, %529 : vector<8x128xf32>
    %531 = arith.addf %451, %530 : vector<8x128xf32>
    %532 = arith.addf %452, %524 : vector<8x128xf32>
    %533 = arith.addf %453, %529 : vector<8x128xf32>
    %534 = arith.mulf %507, %523 : vector<8x128xf32>
    %c1_i32_205 = arith.constant 1 : i32
    %535 = vector.broadcast %c1_i32_205 : i32 to vector<8x128xi32>
    %536 = arith.cmpi eq, %488, %535 : vector<8x128xi32>
    %cst_206 = arith.constant 1.000000e+00 : f32
    %cst_207 = arith.constant 0.000000e+00 : f32
    %537 = vector.broadcast %cst_206 : f32 to vector<8x128xf32>
    %538 = vector.broadcast %cst_207 : f32 to vector<8x128xf32>
    %539 = arith.select %536, %537, %538 : vector<8x128xi1>, vector<8x128xf32>
    %540 = arith.mulf %534, %539 : vector<8x128xf32>
    %541 = arith.addf %461, %540 : vector<8x128xf32>
    %542 = arith.addf %462, %534 : vector<8x128xf32>
    %543 = arith.addf %463, %539 : vector<8x128xf32>
    %544 = arith.mulf %509, %523 : vector<8x128xf32>
    %c2_i32_208 = arith.constant 2 : i32
    %545 = vector.broadcast %c2_i32_208 : i32 to vector<8x128xi32>
    %546 = arith.cmpi eq, %488, %545 : vector<8x128xi32>
    %cst_209 = arith.constant 1.000000e+00 : f32
    %cst_210 = arith.constant 0.000000e+00 : f32
    %547 = vector.broadcast %cst_209 : f32 to vector<8x128xf32>
    %548 = vector.broadcast %cst_210 : f32 to vector<8x128xf32>
    %549 = arith.select %546, %547, %548 : vector<8x128xi1>, vector<8x128xf32>
    %550 = arith.mulf %544, %549 : vector<8x128xf32>
    %551 = arith.addf %471, %550 : vector<8x128xf32>
    %552 = arith.addf %472, %544 : vector<8x128xf32>
    %553 = arith.addf %473, %549 : vector<8x128xf32>
    %554 = arith.mulf %511, %523 : vector<8x128xf32>
    %c3_i32_211 = arith.constant 3 : i32
    %555 = vector.broadcast %c3_i32_211 : i32 to vector<8x128xi32>
    %556 = arith.cmpi eq, %488, %555 : vector<8x128xi32>
    %cst_212 = arith.constant 1.000000e+00 : f32
    %cst_213 = arith.constant 0.000000e+00 : f32
    %557 = vector.broadcast %cst_212 : f32 to vector<8x128xf32>
    %558 = vector.broadcast %cst_213 : f32 to vector<8x128xf32>
    %559 = arith.select %556, %557, %558 : vector<8x128xi1>, vector<8x128xf32>
    %560 = arith.mulf %554, %559 : vector<8x128xf32>
    %561 = arith.addf %481, %560 : vector<8x128xf32>
    %562 = arith.addf %482, %554 : vector<8x128xf32>
    %563 = arith.addf %483, %559 : vector<8x128xf32>
    %c7_i32 = arith.constant 7 : i32
    %c8_i32_214 = arith.constant 8 : i32
    %564 = arith.muli %c7_i32, %c8_i32_214 : i32
    %565 = tpu.assume_multiple %564, 8 : i32
    %c0_215 = arith.constant 0 : index
    %c0_216 = arith.constant 0 : index
    %566 = arith.index_cast %565 : i32 to index
    %c0_217 = arith.constant 0 : index
    %567 = vector.load %arg4[%c0_215, %c0_216, %566, %c0_217] : memref<1x1x64x128xi32, #tpu.memory_space<vmem>>, vector<1x1x8x128xi32>
    %568 = vector.shape_cast %567 : vector<1x1x8x128xi32> to vector<8x128xi32>
    %c0_218 = arith.constant 0 : index
    %c0_219 = arith.constant 0 : index
    %569 = arith.index_cast %565 : i32 to index
    %c0_220 = arith.constant 0 : index
    %570 = vector.load %arg3[%c0_218, %c0_219, %569, %c0_220] : memref<1x4x64x128xf32, #tpu.memory_space<vmem>>, vector<1x1x8x128xf32>
    %571 = vector.shape_cast %570 : vector<1x1x8x128xf32> to vector<8x128xf32>
    %c0_221 = arith.constant 0 : index
    %c1_222 = arith.constant 1 : index
    %572 = arith.index_cast %565 : i32 to index
    %c0_223 = arith.constant 0 : index
    %573 = vector.load %arg3[%c0_221, %c1_222, %572, %c0_223] : memref<1x4x64x128xf32, #tpu.memory_space<vmem>>, vector<1x1x8x128xf32>
    %574 = vector.shape_cast %573 : vector<1x1x8x128xf32> to vector<8x128xf32>
    %c0_224 = arith.constant 0 : index
    %c2_225 = arith.constant 2 : index
    %575 = arith.index_cast %565 : i32 to index
    %c0_226 = arith.constant 0 : index
    %576 = vector.load %arg3[%c0_224, %c2_225, %575, %c0_226] : memref<1x4x64x128xf32, #tpu.memory_space<vmem>>, vector<1x1x8x128xf32>
    %577 = vector.shape_cast %576 : vector<1x1x8x128xf32> to vector<8x128xf32>
    %c0_227 = arith.constant 0 : index
    %c3_228 = arith.constant 3 : index
    %578 = arith.index_cast %565 : i32 to index
    %c0_229 = arith.constant 0 : index
    %579 = vector.load %arg3[%c0_227, %c3_228, %578, %c0_229] : memref<1x4x64x128xf32, #tpu.memory_space<vmem>>, vector<1x1x8x128xf32>
    %580 = vector.shape_cast %579 : vector<1x1x8x128xf32> to vector<8x128xf32>
    %581 = arith.maximumf %571, %574 : vector<8x128xf32>
    %582 = arith.maximumf %581, %577 : vector<8x128xf32>
    %583 = arith.maximumf %582, %580 : vector<8x128xf32>
    %584 = arith.subf %571, %583 : vector<8x128xf32>
    %585 = math.exp %584 : vector<8x128xf32>
    %586 = arith.subf %574, %583 : vector<8x128xf32>
    %587 = math.exp %586 : vector<8x128xf32>
    %588 = arith.subf %577, %583 : vector<8x128xf32>
    %589 = math.exp %588 : vector<8x128xf32>
    %590 = arith.subf %580, %583 : vector<8x128xf32>
    %591 = math.exp %590 : vector<8x128xf32>
    %592 = arith.addf %585, %587 : vector<8x128xf32>
    %593 = arith.addf %592, %589 : vector<8x128xf32>
    %594 = arith.addf %593, %591 : vector<8x128xf32>
    %595 = tpu.reciprocal %594 {approx = true} : vector<8x128xf32> -> vector<8x128xf32>
    %596 = arith.mulf %594, %595 : vector<8x128xf32>
    %cst_230 = arith.constant 2.000000e+00 : f32
    %597 = vector.broadcast %cst_230 : f32 to vector<8x128xf32>
    %598 = arith.subf %597, %596 : vector<8x128xf32>
    %599 = arith.mulf %595, %598 : vector<8x128xf32>
    %c0_i32_231 = arith.constant 0 : i32
    %600 = vector.broadcast %c0_i32_231 : i32 to vector<8x128xi32>
    %601 = arith.cmpi sge, %568, %600 : vector<8x128xi32>
    %cst_232 = arith.constant 0.000000e+00 : f32
    %602 = vector.broadcast %cst_232 : f32 to vector<8x128xf32>
    %603 = arith.select %601, %599, %602 : vector<8x128xi1>, vector<8x128xf32>
    %604 = arith.mulf %585, %603 : vector<8x128xf32>
    %c0_i32_233 = arith.constant 0 : i32
    %605 = vector.broadcast %c0_i32_233 : i32 to vector<8x128xi32>
    %606 = arith.cmpi eq, %568, %605 : vector<8x128xi32>
    %cst_234 = arith.constant 1.000000e+00 : f32
    %cst_235 = arith.constant 0.000000e+00 : f32
    %607 = vector.broadcast %cst_234 : f32 to vector<8x128xf32>
    %608 = vector.broadcast %cst_235 : f32 to vector<8x128xf32>
    %609 = arith.select %606, %607, %608 : vector<8x128xi1>, vector<8x128xf32>
    %610 = arith.mulf %604, %609 : vector<8x128xf32>
    %611 = arith.addf %531, %610 : vector<8x128xf32>
    %612 = arith.addf %532, %604 : vector<8x128xf32>
    %613 = arith.addf %533, %609 : vector<8x128xf32>
    %614 = arith.mulf %587, %603 : vector<8x128xf32>
    %c1_i32_236 = arith.constant 1 : i32
    %615 = vector.broadcast %c1_i32_236 : i32 to vector<8x128xi32>
    %616 = arith.cmpi eq, %568, %615 : vector<8x128xi32>
    %cst_237 = arith.constant 1.000000e+00 : f32
    %cst_238 = arith.constant 0.000000e+00 : f32
    %617 = vector.broadcast %cst_237 : f32 to vector<8x128xf32>
    %618 = vector.broadcast %cst_238 : f32 to vector<8x128xf32>
    %619 = arith.select %616, %617, %618 : vector<8x128xi1>, vector<8x128xf32>
    %620 = arith.mulf %614, %619 : vector<8x128xf32>
    %621 = arith.addf %541, %620 : vector<8x128xf32>
    %622 = arith.addf %542, %614 : vector<8x128xf32>
    %623 = arith.addf %543, %619 : vector<8x128xf32>
    %624 = arith.mulf %589, %603 : vector<8x128xf32>
    %c2_i32_239 = arith.constant 2 : i32
    %625 = vector.broadcast %c2_i32_239 : i32 to vector<8x128xi32>
    %626 = arith.cmpi eq, %568, %625 : vector<8x128xi32>
    %cst_240 = arith.constant 1.000000e+00 : f32
    %cst_241 = arith.constant 0.000000e+00 : f32
    %627 = vector.broadcast %cst_240 : f32 to vector<8x128xf32>
    %628 = vector.broadcast %cst_241 : f32 to vector<8x128xf32>
    %629 = arith.select %626, %627, %628 : vector<8x128xi1>, vector<8x128xf32>
    %630 = arith.mulf %624, %629 : vector<8x128xf32>
    %631 = arith.addf %551, %630 : vector<8x128xf32>
    %632 = arith.addf %552, %624 : vector<8x128xf32>
    %633 = arith.addf %553, %629 : vector<8x128xf32>
    %634 = arith.mulf %591, %603 : vector<8x128xf32>
    %c3_i32_242 = arith.constant 3 : i32
    %635 = vector.broadcast %c3_i32_242 : i32 to vector<8x128xi32>
    %636 = arith.cmpi eq, %568, %635 : vector<8x128xi32>
    %cst_243 = arith.constant 1.000000e+00 : f32
    %cst_244 = arith.constant 0.000000e+00 : f32
    %637 = vector.broadcast %cst_243 : f32 to vector<8x128xf32>
    %638 = vector.broadcast %cst_244 : f32 to vector<8x128xf32>
    %639 = arith.select %636, %637, %638 : vector<8x128xi1>, vector<8x128xf32>
    %640 = arith.mulf %634, %639 : vector<8x128xf32>
    %641 = arith.addf %561, %640 : vector<8x128xf32>
    %642 = arith.addf %562, %634 : vector<8x128xf32>
    %643 = arith.addf %563, %639 : vector<8x128xf32>
    %c8_i32_245 = arith.constant 8 : i32
    %c0_246 = arith.constant 0 : index
    %c0_247 = arith.constant 0 : index
    %c0_248 = arith.constant 0 : index
    %c0_249 = arith.constant 0 : index
    %644 = vector.load %arg5[%c0_246, %c0_247, %c0_248, %c0_249] : memref<1x1x96x128xf32, #tpu.memory_space<vmem>>, vector<1x1x8x128xf32>
    %645 = vector.shape_cast %644 : vector<1x1x8x128xf32> to vector<8x128xf32>
    %646 = arith.addf %645, %611 : vector<8x128xf32>
    %c0_250 = arith.constant 0 : index
    %c0_251 = arith.constant 0 : index
    %c0_252 = arith.constant 0 : index
    %c0_253 = arith.constant 0 : index
    %647 = vector.load %arg5[%c0_250, %c0_251, %c0_252, %c0_253] : memref<1x1x96x128xf32, #tpu.memory_space<vmem>>, vector<1x1x8x128xf32>
    %648 = vector.shape_cast %647 : vector<1x1x8x128xf32> to vector<8x128xf32>
    %649 = vector.shape_cast %646 : vector<8x128xf32> to vector<1x1x8x128xf32>
    tpu.vector_store %arg5[%c0_250, %c0_251, %c0_252, %c0_253], %649 {strides = array<i32>} : memref<1x1x96x128xf32, #tpu.memory_space<vmem>>, vector<1x1x8x128xf32>,
    %c0_254 = arith.constant 0 : index
    %c0_255 = arith.constant 0 : index
    %c8 = arith.constant 8 : index
    %c0_256 = arith.constant 0 : index
    %650 = vector.load %arg5[%c0_254, %c0_255, %c8, %c0_256] : memref<1x1x96x128xf32, #tpu.memory_space<vmem>>, vector<1x1x8x128xf32>
    %651 = vector.shape_cast %650 : vector<1x1x8x128xf32> to vector<8x128xf32>
    %652 = arith.addf %651, %621 : vector<8x128xf32>
    %c0_257 = arith.constant 0 : index
    %c0_258 = arith.constant 0 : index
    %c8_259 = arith.constant 8 : index
    %c0_260 = arith.constant 0 : index
    %653 = vector.load %arg5[%c0_257, %c0_258, %c8_259, %c0_260] : memref<1x1x96x128xf32, #tpu.memory_space<vmem>>, vector<1x1x8x128xf32>
    %654 = vector.shape_cast %653 : vector<1x1x8x128xf32> to vector<8x128xf32>
    %655 = vector.shape_cast %652 : vector<8x128xf32> to vector<1x1x8x128xf32>
    tpu.vector_store %arg5[%c0_257, %c0_258, %c8_259, %c0_260], %655 {strides = array<i32>} : memref<1x1x96x128xf32, #tpu.memory_space<vmem>>, vector<1x1x8x128xf32>,
    %c0_261 = arith.constant 0 : index
    %c0_262 = arith.constant 0 : index
    %c16 = arith.constant 16 : index
    %c0_263 = arith.constant 0 : index
    %656 = vector.load %arg5[%c0_261, %c0_262, %c16, %c0_263] : memref<1x1x96x128xf32, #tpu.memory_space<vmem>>, vector<1x1x8x128xf32>
    %657 = vector.shape_cast %656 : vector<1x1x8x128xf32> to vector<8x128xf32>
    %658 = arith.addf %657, %631 : vector<8x128xf32>
    %c0_264 = arith.constant 0 : index
    %c0_265 = arith.constant 0 : index
    %c16_266 = arith.constant 16 : index
    %c0_267 = arith.constant 0 : index
    %659 = vector.load %arg5[%c0_264, %c0_265, %c16_266, %c0_267] : memref<1x1x96x128xf32, #tpu.memory_space<vmem>>, vector<1x1x8x128xf32>
    %660 = vector.shape_cast %659 : vector<1x1x8x128xf32> to vector<8x128xf32>
    %661 = vector.shape_cast %658 : vector<8x128xf32> to vector<1x1x8x128xf32>
    tpu.vector_store %arg5[%c0_264, %c0_265, %c16_266, %c0_267], %661 {strides = array<i32>} : memref<1x1x96x128xf32, #tpu.memory_space<vmem>>, vector<1x1x8x128xf32>,
    %c0_268 = arith.constant 0 : index
    %c0_269 = arith.constant 0 : index
    %c24 = arith.constant 24 : index
    %c0_270 = arith.constant 0 : index
    %662 = vector.load %arg5[%c0_268, %c0_269, %c24, %c0_270] : memref<1x1x96x128xf32, #tpu.memory_space<vmem>>, vector<1x1x8x128xf32>
    %663 = vector.shape_cast %662 : vector<1x1x8x128xf32> to vector<8x128xf32>
    %664 = arith.addf %663, %641 : vector<8x128xf32>
    %c0_271 = arith.constant 0 : index
    %c0_272 = arith.constant 0 : index
    %c24_273 = arith.constant 24 : index
    %c0_274 = arith.constant 0 : index
    %665 = vector.load %arg5[%c0_271, %c0_272, %c24_273, %c0_274] : memref<1x1x96x128xf32, #tpu.memory_space<vmem>>, vector<1x1x8x128xf32>
    %666 = vector.shape_cast %665 : vector<1x1x8x128xf32> to vector<8x128xf32>
    %667 = vector.shape_cast %664 : vector<8x128xf32> to vector<1x1x8x128xf32>
    tpu.vector_store %arg5[%c0_271, %c0_272, %c24_273, %c0_274], %667 {strides = array<i32>} : memref<1x1x96x128xf32, #tpu.memory_space<vmem>>, vector<1x1x8x128xf32>,
    %c0_275 = arith.constant 0 : index
    %c0_276 = arith.constant 0 : index
    %c32 = arith.constant 32 : index
    %c0_277 = arith.constant 0 : index
    %668 = vector.load %arg5[%c0_275, %c0_276, %c32, %c0_277] : memref<1x1x96x128xf32, #tpu.memory_space<vmem>>, vector<1x1x8x128xf32>
    %669 = vector.shape_cast %668 : vector<1x1x8x128xf32> to vector<8x128xf32>
    %670 = arith.addf %669, %612 : vector<8x128xf32>
    %c0_278 = arith.constant 0 : index
    %c0_279 = arith.constant 0 : index
    %c32_280 = arith.constant 32 : index
    %c0_281 = arith.constant 0 : index
    %671 = vector.load %arg5[%c0_278, %c0_279, %c32_280, %c0_281] : memref<1x1x96x128xf32, #tpu.memory_space<vmem>>, vector<1x1x8x128xf32>
    %672 = vector.shape_cast %671 : vector<1x1x8x128xf32> to vector<8x128xf32>
    %673 = vector.shape_cast %670 : vector<8x128xf32> to vector<1x1x8x128xf32>
    tpu.vector_store %arg5[%c0_278, %c0_279, %c32_280, %c0_281], %673 {strides = array<i32>} : memref<1x1x96x128xf32, #tpu.memory_space<vmem>>, vector<1x1x8x128xf32>,
    %c0_282 = arith.constant 0 : index
    %c0_283 = arith.constant 0 : index
    %c40 = arith.constant 40 : index
    %c0_284 = arith.constant 0 : index
    %674 = vector.load %arg5[%c0_282, %c0_283, %c40, %c0_284] : memref<1x1x96x128xf32, #tpu.memory_space<vmem>>, vector<1x1x8x128xf32>
    %675 = vector.shape_cast %674 : vector<1x1x8x128xf32> to vector<8x128xf32>
    %676 = arith.addf %675, %622 : vector<8x128xf32>
    %c0_285 = arith.constant 0 : index
    %c0_286 = arith.constant 0 : index
    %c40_287 = arith.constant 40 : index
    %c0_288 = arith.constant 0 : index
    %677 = vector.load %arg5[%c0_285, %c0_286, %c40_287, %c0_288] : memref<1x1x96x128xf32, #tpu.memory_space<vmem>>, vector<1x1x8x128xf32>
    %678 = vector.shape_cast %677 : vector<1x1x8x128xf32> to vector<8x128xf32>
    %679 = vector.shape_cast %676 : vector<8x128xf32> to vector<1x1x8x128xf32>
    tpu.vector_store %arg5[%c0_285, %c0_286, %c40_287, %c0_288], %679 {strides = array<i32>} : memref<1x1x96x128xf32, #tpu.memory_space<vmem>>, vector<1x1x8x128xf32>,
    %c0_289 = arith.constant 0 : index
    %c0_290 = arith.constant 0 : index
    %c48 = arith.constant 48 : index
    %c0_291 = arith.constant 0 : index
    %680 = vector.load %arg5[%c0_289, %c0_290, %c48, %c0_291] : memref<1x1x96x128xf32, #tpu.memory_space<vmem>>, vector<1x1x8x128xf32>
    %681 = vector.shape_cast %680 : vector<1x1x8x128xf32> to vector<8x128xf32>
    %682 = arith.addf %681, %632 : vector<8x128xf32>
    %c0_292 = arith.constant 0 : index
    %c0_293 = arith.constant 0 : index
    %c48_294 = arith.constant 48 : index
    %c0_295 = arith.constant 0 : index
    %683 = vector.load %arg5[%c0_292, %c0_293, %c48_294, %c0_295] : memref<1x1x96x128xf32, #tpu.memory_space<vmem>>, vector<1x1x8x128xf32>
    %684 = vector.shape_cast %683 : vector<1x1x8x128xf32> to vector<8x128xf32>
    %685 = vector.shape_cast %682 : vector<8x128xf32> to vector<1x1x8x128xf32>
    tpu.vector_store %arg5[%c0_292, %c0_293, %c48_294, %c0_295], %685 {strides = array<i32>} : memref<1x1x96x128xf32, #tpu.memory_space<vmem>>, vector<1x1x8x128xf32>,
    %c0_296 = arith.constant 0 : index
    %c0_297 = arith.constant 0 : index
    %c56 = arith.constant 56 : index
    %c0_298 = arith.constant 0 : index
    %686 = vector.load %arg5[%c0_296, %c0_297, %c56, %c0_298] : memref<1x1x96x128xf32, #tpu.memory_space<vmem>>, vector<1x1x8x128xf32>
    %687 = vector.shape_cast %686 : vector<1x1x8x128xf32> to vector<8x128xf32>
    %688 = arith.addf %687, %642 : vector<8x128xf32>
    %c0_299 = arith.constant 0 : index
    %c0_300 = arith.constant 0 : index
    %c56_301 = arith.constant 56 : index
    %c0_302 = arith.constant 0 : index
    %689 = vector.load %arg5[%c0_299, %c0_300, %c56_301, %c0_302] : memref<1x1x96x128xf32, #tpu.memory_space<vmem>>, vector<1x1x8x128xf32>
    %690 = vector.shape_cast %689 : vector<1x1x8x128xf32> to vector<8x128xf32>
    %691 = vector.shape_cast %688 : vector<8x128xf32> to vector<1x1x8x128xf32>
    tpu.vector_store %arg5[%c0_299, %c0_300, %c56_301, %c0_302], %691 {strides = array<i32>} : memref<1x1x96x128xf32, #tpu.memory_space<vmem>>, vector<1x1x8x128xf32>,
    %c0_303 = arith.constant 0 : index
    %c0_304 = arith.constant 0 : index
    %c64 = arith.constant 64 : index
    %c0_305 = arith.constant 0 : index
    %692 = vector.load %arg5[%c0_303, %c0_304, %c64, %c0_305] : memref<1x1x96x128xf32, #tpu.memory_space<vmem>>, vector<1x1x8x128xf32>
    %693 = vector.shape_cast %692 : vector<1x1x8x128xf32> to vector<8x128xf32>
    %694 = arith.addf %693, %613 : vector<8x128xf32>
    %c0_306 = arith.constant 0 : index
    %c0_307 = arith.constant 0 : index
    %c64_308 = arith.constant 64 : index
    %c0_309 = arith.constant 0 : index
    %695 = vector.load %arg5[%c0_306, %c0_307, %c64_308, %c0_309] : memref<1x1x96x128xf32, #tpu.memory_space<vmem>>, vector<1x1x8x128xf32>
    %696 = vector.shape_cast %695 : vector<1x1x8x128xf32> to vector<8x128xf32>
    %697 = vector.shape_cast %694 : vector<8x128xf32> to vector<1x1x8x128xf32>
    tpu.vector_store %arg5[%c0_306, %c0_307, %c64_308, %c0_309], %697 {strides = array<i32>} : memref<1x1x96x128xf32, #tpu.memory_space<vmem>>, vector<1x1x8x128xf32>,
    %c0_310 = arith.constant 0 : index
    %c0_311 = arith.constant 0 : index
    %c72 = arith.constant 72 : index
    %c0_312 = arith.constant 0 : index
    %698 = vector.load %arg5[%c0_310, %c0_311, %c72, %c0_312] : memref<1x1x96x128xf32, #tpu.memory_space<vmem>>, vector<1x1x8x128xf32>
    %699 = vector.shape_cast %698 : vector<1x1x8x128xf32> to vector<8x128xf32>
    %700 = arith.addf %699, %623 : vector<8x128xf32>
    %c0_313 = arith.constant 0 : index
    %c0_314 = arith.constant 0 : index
    %c72_315 = arith.constant 72 : index
    %c0_316 = arith.constant 0 : index
    %701 = vector.load %arg5[%c0_313, %c0_314, %c72_315, %c0_316] : memref<1x1x96x128xf32, #tpu.memory_space<vmem>>, vector<1x1x8x128xf32>
    %702 = vector.shape_cast %701 : vector<1x1x8x128xf32> to vector<8x128xf32>
    %703 = vector.shape_cast %700 : vector<8x128xf32> to vector<1x1x8x128xf32>
    tpu.vector_store %arg5[%c0_313, %c0_314, %c72_315, %c0_316], %703 {strides = array<i32>} : memref<1x1x96x128xf32, #tpu.memory_space<vmem>>, vector<1x1x8x128xf32>,
    %c0_317 = arith.constant 0 : index
    %c0_318 = arith.constant 0 : index
    %c80 = arith.constant 80 : index
    %c0_319 = arith.constant 0 : index
    %704 = vector.load %arg5[%c0_317, %c0_318, %c80, %c0_319] : memref<1x1x96x128xf32, #tpu.memory_space<vmem>>, vector<1x1x8x128xf32>
    %705 = vector.shape_cast %704 : vector<1x1x8x128xf32> to vector<8x128xf32>
    %706 = arith.addf %705, %633 : vector<8x128xf32>
    %c0_320 = arith.constant 0 : index
    %c0_321 = arith.constant 0 : index
    %c80_322 = arith.constant 80 : index
    %c0_323 = arith.constant 0 : index
    %707 = vector.load %arg5[%c0_320, %c0_321, %c80_322, %c0_323] : memref<1x1x96x128xf32, #tpu.memory_space<vmem>>, vector<1x1x8x128xf32>
    %708 = vector.shape_cast %707 : vector<1x1x8x128xf32> to vector<8x128xf32>
    %709 = vector.shape_cast %706 : vector<8x128xf32> to vector<1x1x8x128xf32>
    tpu.vector_store %arg5[%c0_320, %c0_321, %c80_322, %c0_323], %709 {strides = array<i32>} : memref<1x1x96x128xf32, #tpu.memory_space<vmem>>, vector<1x1x8x128xf32>,
    %c0_324 = arith.constant 0 : index
    %c0_325 = arith.constant 0 : index
    %c88 = arith.constant 88 : index
    %c0_326 = arith.constant 0 : index
    %710 = vector.load %arg5[%c0_324, %c0_325, %c88, %c0_326] : memref<1x1x96x128xf32, #tpu.memory_space<vmem>>, vector<1x1x8x128xf32>
    %711 = vector.shape_cast %710 : vector<1x1x8x128xf32> to vector<8x128xf32>
    %712 = arith.addf %711, %643 : vector<8x128xf32>
    %c0_327 = arith.constant 0 : index
    %c0_328 = arith.constant 0 : index
    %c88_329 = arith.constant 88 : index
    %c0_330 = arith.constant 0 : index
    %713 = vector.load %arg5[%c0_327, %c0_328, %c88_329, %c0_330] : memref<1x1x96x128xf32, #tpu.memory_space<vmem>>, vector<1x1x8x128xf32>
    %714 = vector.shape_cast %713 : vector<1x1x8x128xf32> to vector<8x128xf32>
    %715 = vector.shape_cast %712 : vector<8x128xf32> to vector<1x1x8x128xf32>
    tpu.vector_store %arg5[%c0_327, %c0_328, %c88_329, %c0_330], %715 {strides = array<i32>} : memref<1x1x96x128xf32, #tpu.memory_space<vmem>>, vector<1x1x8x128xf32>,
    return
  }
  func.func @transform_0(%arg0: i32, %arg1: i32, %arg2: i32) -> (i32, i32, i32, i32) {
    %c1_i32 = arith.constant 1 : i32
    %0 = arith.muli %arg0, %c1_i32 : i32
    %1 = arith.addi %0, %arg2 : i32
    %c0_i32 = arith.constant 0 : i32
    %c0_i32_0 = arith.constant 0 : i32
    %c0_i32_1 = arith.constant 0 : i32
    return %arg1, %c0_i32, %1, %c0_i32_0 : i32, i32, i32, i32
  }
  func.func @transform_1(%arg0: i32, %arg1: i32, %arg2: i32) -> (i32, i32, i32, i32) {
    %c1_i32 = arith.constant 1 : i32
    %0 = arith.muli %arg0, %c1_i32 : i32
    %1 = arith.addi %0, %arg2 : i32
    %c0_i32 = arith.constant 0 : i32
    %c0_i32_0 = arith.constant 0 : i32
    %c0_i32_1 = arith.constant 0 : i32
    return %arg1, %c0_i32, %1, %c0_i32_0 : i32, i32, i32, i32
  }
  func.func @transform_2(%arg0: i32, %arg1: i32, %arg2: i32) -> (i32, i32, i32, i32) {
    %c0_i32 = arith.constant 0 : i32
    %c0_i32_0 = arith.constant 0 : i32
    %c0_i32_1 = arith.constant 0 : i32
    return %arg0, %arg1, %c0_i32, %c0_i32_0 : i32, i32, i32, i32
  }
}

</mosaic_0001>

<llo_original>
// kernel: tpu_custom_call.1
$region0: #{tpu_custom_call.1}
  #allocation0 [shape = 'u32[]', space=smem, size = 0x4, offset = 0x4, fixed_abs, tag = 'smem constant byte address 0x4 - core index']
  #allocation1 [shape = 'u32[144,128]{1,0:T(1,128)}', space=vmem, size = 0x12000, scoped, tag = 'internal scratch']
  %s0 = inlined_call_operand.hbm [shape: f32[2,4,64,128], index: 0, kind: input, shape index: {}]
  %s1 = inlined_call_operand.hbm [shape: s32[2,1,64,128], index: 1, kind: input, shape index: {}]
  %s2 = inlined_call_operand.hbm [shape: f32[1,2,96,128], index: 2, kind: output, shape index: {}]
  %s3 = sld [smem:[#allocation0]]
  $region53: #{tpu_custom_call.1} parent=0
    _
  %s5 = ssub.s32 1, %s3
  %s6 = scalar_select 0, %s5, %s3
  $region1: #{tpu_custom_call.1} parent=0
    #allocation2 [shape = 'u8[262144]{0}', space=vmem, size = 0x40000, scoped, tag = 'input window, operand 0']
    #allocation3 [shape = 's32[2]{0}', space=sflag, size = 0x8, scoped, tag = 'scoped memory for tpu_custom_call.1']
    #allocation4 [shape = 's32[2]{0}', space=sflag, size = 0x8, scoped, tag = 'scoped memory for tpu_custom_call.1']
    #allocation5 [shape = 'u8[65536]{0}', space=vmem, size = 0x10000, scoped, tag = 'input window, operand 1']
    #allocation6 [shape = 's32[2]{0}', space=sflag, size = 0x8, scoped, tag = 'scoped memory for tpu_custom_call.1']
    #allocation7 [shape = 'u8[98304]{0}', space=vmem, size = 0x18000, scoped, tag = 'output window, operand 0']
    %7 = vsyncpa [#allocation3], 0
    %s8 = scalar_lea.sflag [#allocation3], 1
    %9 = vsyncpa %s8, 0
    %10 = vsyncpa [#allocation6], 0
    %s11 = scalar_lea.sflag [#allocation6], 1
    %12 = vsyncpa %s11, 0
    %13 = vsyncpa [#allocation4], 0
    %s14 = scalar_lea.sflag [#allocation4], 1
    %15 = vsyncpa %s14, 0
    loop: start=0, step=1, limit=4
    $region2: #{tpu_custom_call.1} parent=1 // loop_pre_header
      _
    $region3: #{tpu_custom_call.1} parent=1 // loop_header
      %s17 = sphi 0, %s21
      %p18 = scmp.ge.s32.totalorder %s17, 4
      %s24 = sphi 0, %s43
      %s25 = sphi 0, %s39
      %s26 = sphi 0, %s35
      %s27 = sphi 0, %s24
      %s28 = sphi 0, %s25
      %s29 = sphi 0, %s26
      %s30 = sphi 0, %s27
      %s31 = sphi 0, %s28
      %s32 = sphi 0, %s29
      %s50 = sphi 0, %s52
      %s53 = sphi 0, %s50
      %s54 = sphi 0, %s53
      %s70 = sphi 0, %s54
      %s80 = sphi 0, %s82
      %s83 = sphi 0, %s80
      %s84 = sphi 0, %s83
      %s100 = sphi 0, %s84
      %s108 = sphi 0, %s110
      %s111 = sphi 0, %s108
      %s112 = sphi 0, %s111
      %s128 = sphi 0, %s112
    $region4: #{tpu_custom_call.1} parent=1 // loop_header_branch
      %20 = sbr.rel (%p18) target = $region8
    $region5: #{tpu_custom_call.1} parent=1 // loop_body
      %s22 = ssub.s32 %s17, 1
      %s23 = ssub.s32 %s17, 2
      %s33 = sadd.s32 1, %s26
      %p34 = scmp.ge.s32.totalorder %s33, 1
      %s35 = scalar_select %p34, 0, %s33
      %s36 = sadd.s32 1, %s25
      %s37 = scalar_select %p34, %s36, %s25
      %p38 = scmp.ge.s32.totalorder %s37, 2
      %s39 = scalar_select %p38, 0, %s37
      %s40 = sadd.s32 1, %s24
      %s41 = scalar_select %p38, %s40, %s24
      %p42 = scmp.ge.s32.totalorder %s41, 1
      %s43 = scalar_select %p42, 0, %s41
      %s44 = sadd.s32 %s24, %s26
      %s45 = sadd.s32 %s43, %s35
      %s46 = ssub.s32 %s25, %s39
      %s47 = ssub.s32 %s44, %s45
      %s48 = sor.u32 %s46, %s47
      %p49 = scmp.eq.s32.totalorder %s48, 0
      %s51 = sadd.s32 %s50, 1
      %s52 = scalar_select %p49, %s50, %s51
      %p55 = pneg %p49
      %p56 = scmp.eq.s32.totalorder %s17, 1
      %p57 = por %p55, %p56
      %p58 = scmp.ne.s32.totalorder %s50, %s53
      %p59 = scmp.eq.s32.totalorder %s17, 0
      %p60 = por %p58, %p59
      %p61 = scmp.ne.s32.totalorder %s50, %s53
      %p62 = scmp.eq.s32.totalorder %s22, 1
      %p63 = por %p61, %p62
      %p64 = scmp.ne.s32.totalorder %s53, %s54
      %p65 = scmp.eq.s32.totalorder %s22, 0
      %p66 = por %p64, %p65
      %p67 = scmp.ne.s32.totalorder %s53, %s54
      %p68 = scmp.eq.s32.totalorder %s23, 1
      %p69 = por %p67, %p68
      %p71 = scmp.ne.s32.totalorder %s54, %s70
      %p72 = scmp.eq.s32.totalorder %s23, 0
      %p73 = por %p71, %p72
      %s74 = sadd.s32 %s24, %s26
      %s75 = sadd.s32 %s43, %s35
      %s76 = ssub.s32 %s25, %s39
      %s77 = ssub.s32 %s74, %s75
      %s78 = sor.u32 %s76, %s77
      %p79 = scmp.eq.s32.totalorder %s78, 0
      %s81 = sadd.s32 %s80, 1
      %s82 = scalar_select %p79, %s80, %s81
      %p85 = pneg %p79
      %p86 = scmp.eq.s32.totalorder %s17, 1
      %p87 = por %p85, %p86
      %p88 = scmp.ne.s32.totalorder %s80, %s83
      %p89 = scmp.eq.s32.totalorder %s17, 0
      %p90 = por %p88, %p89
      %p91 = scmp.ne.s32.totalorder %s80, %s83
      %p92 = scmp.eq.s32.totalorder %s22, 1
      %p93 = por %p91, %p92
      %p94 = scmp.ne.s32.totalorder %s83, %s84
      %p95 = scmp.eq.s32.totalorder %s22, 0
      %p96 = por %p94, %p95
      %p97 = scmp.ne.s32.totalorder %s83, %s84
      %p98 = scmp.eq.s32.totalorder %s23, 1
      %p99 = por %p97, %p98
      %p101 = scmp.ne.s32.totalorder %s84, %s100
      %p102 = scmp.eq.s32.totalorder %s23, 0
      %p103 = por %p101, %p102
      %s104 = ssub.s32 %s24, %s43
      %s105 = ssub.s32 %s25, %s39
      %s106 = sor.u32 %s104, %s105
      %p107 = scmp.eq.s32.totalorder %s106, 0
      %s109 = sadd.s32 %s108, 1
      %s110 = scalar_select %p107, %s108, %s109
      %p113 = pneg %p107
      %p114 = scmp.eq.s32.totalorder %s17, 1
      %p115 = por %p113, %p114
      %p116 = scmp.ne.s32.totalorder %s108, %s111
      %p117 = scmp.eq.s32.totalorder %s17, 0
      %p118 = por %p116, %p117
      %p119 = scmp.ne.s32.totalorder %s108, %s111
      %p120 = scmp.eq.s32.totalorder %s22, 1
      %p121 = por %p119, %p120
      %p122 = scmp.ne.s32.totalorder %s111, %s112
      %p123 = scmp.eq.s32.totalorder %s22, 0
      %p124 = por %p122, %p123
      %p125 = scmp.ne.s32.totalorder %s111, %s112
      %p126 = scmp.eq.s32.totalorder %s23, 1
      %p127 = por %p125, %p126
      %p129 = scmp.ne.s32.totalorder %s112, %s128
      %p130 = scmp.eq.s32.totalorder %s23, 0
      %p131 = por %p129, %p130
      %p132 = scmp.le.s32.totalorder 1, %s17
      %p133 = scmp.lt.s32.totalorder %s17, 3
      %p134 = pnand %p132, %p133
      %p135 = pneg %p134
      // Predicated region
      $region9: #{tpu_custom_call.1} parent=5 // pred_check
        _
      $region10: #{tpu_custom_call.1} parent=5 // pred_check_branch
        %137 = sbr.rel (%p134) target = $region12
      $region11: #{tpu_custom_call.1} parent=5 // pred_region
        %s138 = ssub.s32 %s17, 1
      $region12: #{tpu_custom_call.1} parent=5 // pred_fallthru
        _
      %p139 = scmp.lt.s32.totalorder %s17, 2
      // Predicated region
      $region13: #{tpu_custom_call.1} parent=5 // pred_check
        %p140 = pneg %p139
      $region14: #{tpu_custom_call.1} parent=5 // pred_check_branch
        %142 = sbr.rel (%p140) target = $region16
      $region15: #{tpu_custom_call.1} parent=5 // pred_region
        // Predicated region
        $region17: #{tpu_custom_call.1} parent=15 // pred_check
          %p143 = pneg %p60
        $region18: #{tpu_custom_call.1} parent=15 // pred_check_branch
          %145 = sbr.rel (%p143) target = $region20
        $region19: #{tpu_custom_call.1} parent=15 // pred_region
          %s146 = sand.u32 %s50, 1
          %s147 = scalar_lea.sflag [#allocation3], %s146
          %s148 = sand.u32 %s50, 1
          %s149 = smul.addr %s148, 256
          %s150 = scalar_lea.vmem [#allocation2], %s149
          %s151 = sadd.s32 %s24, %s26
          %s152 = smul.u32 8, %s151
          %s154 = ssub.s32 4096, 4096
          %155 = vsyncadd %s147, %s154
          %s156 = smul.addr %s25, 32
          %s157 = sadd.s32 %s152, %s156
          %s158 = smul.addr %s157, 128
          %s159 = scalar_lea.hbm %s0, %s158
          %s160 = sshll.u32 %s150, 4
          %s161 = int_to_ptr.vmem [resolvable:$true] %s160
          %166 = dma.hbm_to_vmem [thread:$0]  %s159, 4096, %s161, %s147, 128, 128, 8
        $region20: #{tpu_custom_call.1} parent=15 // pred_fallthru
          _
        // Predicated region
        $region21: #{tpu_custom_call.1} parent=15 // pred_check
          %p167 = pneg %p90
        $region22: #{tpu_custom_call.1} parent=15 // pred_check_branch
          %169 = sbr.rel (%p167) target = $region24
        $region23: #{tpu_custom_call.1} parent=15 // pred_region
          %s170 = sand.u32 %s80, 1
          %s171 = scalar_lea.sflag [#allocation6], %s170
          %s172 = sand.u32 %s80, 1
          %s173 = smul.addr %s172, 64
          %s174 = scalar_lea.vmem [#allocation5], %s173
          %s175 = sadd.s32 %s24, %s26
          %s176 = smul.u32 8, %s175
          %s178 = ssub.s32 1024, 1024
          %179 = vsyncadd %s171, %s178
          %s180 = smul.addr %s25, 8
          %s181 = sadd.s32 %s176, %s180
          %s182 = smul.addr %s181, 128
          %s183 = scalar_lea.hbm %s1, %s182
          %s184 = sshll.u32 %s174, 4
          %s185 = int_to_ptr.vmem [resolvable:$true] %s184
          %190 = dma.hbm_to_vmem [thread:$0]  %s183, 1024, %s185, %s171, 128, 128, 8
        $region24: #{tpu_custom_call.1} parent=15 // pred_fallthru
          _
      $region16: #{tpu_custom_call.1} parent=5 // pred_fallthru
        _
      %p191 = scmp.le.s32.totalorder 1, %s17
      %p192 = scmp.lt.s32.totalorder %s17, 3
      %p193 = pnand %p191, %p192
      %p194 = pneg %p193
      // Predicated region
      $region25: #{tpu_custom_call.1} parent=5 // pred_check
        _
      $region26: #{tpu_custom_call.1} parent=5 // pred_check_branch
        %196 = sbr.rel (%p193) target = $region28
      $region27: #{tpu_custom_call.1} parent=5 // pred_region
        %s197 = ssub.s32 %s17, 1
        %s198 = sand.u32 %s53, 1
        %s199 = scalar_lea.sflag [#allocation3], %s198
        %s200 = sand.u32 %s53, 1
        %s201 = smul.addr %s200, 256
        %s202 = scalar_lea.vmem [#allocation2], %s201
        // Predicated region
        $region29: #{tpu_custom_call.1} parent=27 // pred_check
          %p203 = pneg %p66
        $region30: #{tpu_custom_call.1} parent=27 // pred_check_branch
          %205 = sbr.rel (%p203) target = $region32
        $region31: #{tpu_custom_call.1} parent=27 // pred_region
          %206 = dma.done %s199, 4096
        $region32: #{tpu_custom_call.1} parent=27 // pred_fallthru
          _
        %s207 = sand.u32 %s83, 1
        %s208 = scalar_lea.sflag [#allocation6], %s207
        %s209 = sand.u32 %s83, 1
        %s210 = smul.addr %s209, 64
        %s211 = scalar_lea.vmem [#allocation5], %s210
        // Predicated region
        $region33: #{tpu_custom_call.1} parent=27 // pred_check
          %p212 = pneg %p96
        $region34: #{tpu_custom_call.1} parent=27 // pred_check_branch
          %214 = sbr.rel (%p212) target = $region36
        $region35: #{tpu_custom_call.1} parent=27 // pred_region
          %215 = dma.done %s208, 1024
        $region36: #{tpu_custom_call.1} parent=27 // pred_fallthru
          _
        %s216 = sand.u32 %s53, 1
        %s217 = scalar_lea.sflag [#allocation3], %s216
        %s218 = sand.u32 %s53, 1
        %s219 = smul.addr %s218, 256
        %s220 = scalar_lea.vmem [#allocation2], %s219
        %p221 = pneg %p66
        %p222 = pneg %p63
        %s223 = sand.u32 %s83, 1
        %s224 = scalar_lea.sflag [#allocation6], %s223
        %s225 = sand.u32 %s83, 1
        %s226 = smul.addr %s225, 64
        %s227 = scalar_lea.vmem [#allocation5], %s226
        %p228 = pneg %p96
        %p229 = pneg %p93
        %p230 = pneg %p124
        %p231 = pneg %p121
        %s232 = sand.u32 %s111, 1
        %s233 = scalar_lea.sflag [#allocation4], %s232
        %s234 = sand.u32 %s111, 1
        %s235 = smul.addr %s234, 96
        %s236 = scalar_lea.vmem [#allocation7], %s235
        %s237 = sadd.s32 %s27, %s29
        %s238 = smul.u32 8, %s237
        %s239 = sadd.s32 %s27, %s29
        %s240 = smul.u32 8, %s239
        %p241 = scmp.eq.s32.totalorder %s29, 0
        // Predicated region
        $region37: #{tpu_custom_call.1} parent=27 // pred_check
          %p242 = pneg %p241
        $region38: #{tpu_custom_call.1} parent=27 // pred_check_branch
          %244 = sbr.rel (%p242) target = $region40
        $region39: #{tpu_custom_call.1} parent=27 // pred_region
          %245 = vst [vmem:[%s236] sm:$0xff] 0.0
          %246 = vst [vmem:[%s236 + $0x8] sm:$0xff] 0.0
          %247 = vst [vmem:[%s236 + $0x10] sm:$0xff] 0.0
          %248 = vst [vmem:[%s236 + $0x18] sm:$0xff] 0.0
          %249 = vst [vmem:[%s236 + $0x20] sm:$0xff] 0.0
          %250 = vst [vmem:[%s236 + $0x28] sm:$0xff] 0.0
          %251 = vst [vmem:[%s236 + $0x30] sm:$0xff] 0.0
          %252 = vst [vmem:[%s236 + $0x38] sm:$0xff] 0.0
          %253 = vst [vmem:[%s236 + $0x40] sm:$0xff] 0.0
          %254 = vst [vmem:[%s236 + $0x48] sm:$0xff] 0.0
          %255 = vst [vmem:[%s236 + $0x50] sm:$0xff] 0.0
          %256 = vst [vmem:[%s236 + $0x58] sm:$0xff] 0.0
        $region40: #{tpu_custom_call.1} parent=27 // pred_fallthru
          _
        %v257 = vld [vmem:[%s211] sm:$0xff]
        %v258 = vld [vmem:[%s202] sm:$0xff]
        %s259 = sadd.s32 0, 64
        %s260 = scalar_lea.vmem %s202, %s259 [#allocation2]
        %v261 = vld [vmem:[%s260] sm:$0xff]
        %s262 = sadd.s32 0, 128
        %s263 = scalar_lea.vmem %s202, %s262 [#allocation2]
        %v264 = vld [vmem:[%s263] sm:$0xff]
        %s265 = sadd.s32 0, 192
        %s266 = scalar_lea.vmem %s202, %s265 [#allocation2]
        %v267 = vld [vmem:[%s266] sm:$0xff]
        %v268 = vmax.f32 %v258, %v261
        %v269 = vmax.f32 %v268, %v264
        %v270 = vmax.f32 %v269, %v267
        %v271 = vsub.f32 %v258, %v270
        %v272 = vmul.f32 %v271, 1.442695
        %v273 = vpow.pop %v272
        %v274 = vsub.f32 %v261, %v270
        %v275 = vmul.f32 %v274, 1.442695
        %v276 = vpow.pop %v275
        %v277 = vsub.f32 %v264, %v270
        %v278 = vmul.f32 %v277, 1.442695
        %v279 = vpow.pop %v278
        %v280 = vsub.f32 %v267, %v270
        %v281 = vmul.f32 %v280, 1.442695
        %v282 = vpow.pop %v281
        %v283 = vadd.f32 %v273, %v276
        %v284 = vadd.f32 %v283, %v279
        %v285 = vadd.f32 %v284, %v282
        %v286 = vrcp.pop %v285
        %v287 = vmul.f32 %v285, %v286
        %v288 = vsub.f32 2.0, %v287
        %v289 = vmul.f32 %v286, %v288
        %vm290 = vcmp.ge.s32.totalorder %v257, 0
        %v291 = vsel %vm290, %v289, 0.0
        %v292 = vmul.f32 %v273, %v291
        %vm293 = vcmp.eq.s32.totalorder %v257, 0
        %v294 = vsel %vm293, 1.0, 0.0
        %v295 = vmul.f32 %v292, %v294
        %v296 = vadd.f32 %v295, 0.0
        %v297 = vadd.f32 %v292, 0.0
        %v298 = vadd.f32 %v294, 0.0
        %v299 = vmul.f32 %v276, %v291
        %vm300 = vcmp.eq.s32.totalorder %v257, 1
        %v301 = vsel %vm300, 1.0, 0.0
        %v302 = vmul.f32 %v299, %v301
        %v303 = vadd.f32 %v302, 0.0
        %v304 = vadd.f32 %v299, 0.0
        %v305 = vadd.f32 %v301, 0.0
        %v306 = vmul.f32 %v279, %v291
        %vm307 = vcmp.eq.s32.totalorder %v257, 2
        %v308 = vsel %vm307, 1.0, 0.0
        %v309 = vmul.f32 %v306, %v308
        %v310 = vadd.f32 %v309, 0.0
        %v311 = vadd.f32 %v306, 0.0
        %v312 = vadd.f32 %v308, 0.0
        %v313 = vmul.f32 %v282, %v291
        %vm314 = vcmp.eq.s32.totalorder %v257, 3
        %v315 = vsel %vm314, 1.0, 0.0
        %v316 = vmul.f32 %v313, %v315
        %v317 = vadd.f32 %v316, 0.0
        %v318 = vadd.f32 %v313, 0.0
        %v319 = vadd.f32 %v315, 0.0
        %s320 = scalar_lea.vmem %s211, 8 [#allocation5]
        %v321 = vld [vmem:[%s320] sm:$0xff]
        %s322 = scalar_lea.vmem %s202, 8 [#allocation2]
        %v323 = vld [vmem:[%s322] sm:$0xff]
        %s324 = sadd.s32 8, 64
        %s325 = scalar_lea.vmem %s202, %s324 [#allocation2]
        %v326 = vld [vmem:[%s325] sm:$0xff]
        %s327 = sadd.s32 8, 128
        %s328 = scalar_lea.vmem %s202, %s327 [#allocation2]
        %v329 = vld [vmem:[%s328] sm:$0xff]
        %s330 = sadd.s32 8, 192
        %s331 = scalar_lea.vmem %s202, %s330 [#allocation2]
        %v332 = vld [vmem:[%s331] sm:$0xff]
        %v333 = vmax.f32 %v323, %v326
        %v334 = vmax.f32 %v333, %v329
        %v335 = vmax.f32 %v334, %v332
        %v336 = vsub.f32 %v323, %v335
        %v337 = vmul.f32 %v336, 1.442695
        %v338 = vpow.pop %v337
        %v339 = vsub.f32 %v326, %v335
        %v340 = vmul.f32 %v339, 1.442695
        %v341 = vpow.pop %v340
        %v342 = vsub.f32 %v329, %v335
        %v343 = vmul.f32 %v342, 1.442695
        %v344 = vpow.pop %v343
        %v345 = vsub.f32 %v332, %v335
        %v346 = vmul.f32 %v345, 1.442695
        %v347 = vpow.pop %v346
        %v348 = vadd.f32 %v338, %v341
        %v349 = vadd.f32 %v348, %v344
        %v350 = vadd.f32 %v349, %v347
        %v351 = vrcp.pop %v350
        %v352 = vmul.f32 %v350, %v351
        %v353 = vsub.f32 2.0, %v352
        %v354 = vmul.f32 %v351, %v353
        %vm355 = vcmp.ge.s32.totalorder %v321, 0
        %v356 = vsel %vm355, %v354, 0.0
        %v357 = vmul.f32 %v338, %v356
        %vm358 = vcmp.eq.s32.totalorder %v321, 0
        %v359 = vsel %vm358, 1.0, 0.0
        %v360 = vmul.f32 %v357, %v359
        %v361 = vadd.f32 %v296, %v360
        %v362 = vadd.f32 %v297, %v357
        %v363 = vadd.f32 %v298, %v359
        %v364 = vmul.f32 %v341, %v356
        %vm365 = vcmp.eq.s32.totalorder %v321, 1
        %v366 = vsel %vm365, 1.0, 0.0
        %v367 = vmul.f32 %v364, %v366
        %v368 = vadd.f32 %v303, %v367
        %v369 = vadd.f32 %v304, %v364
        %v370 = vadd.f32 %v305, %v366
        %v371 = vmul.f32 %v344, %v356
        %vm372 = vcmp.eq.s32.totalorder %v321, 2
        %v373 = vsel %vm372, 1.0, 0.0
        %v374 = vmul.f32 %v371, %v373
        %v375 = vadd.f32 %v310, %v374
        %v376 = vadd.f32 %v311, %v371
        %v377 = vadd.f32 %v312, %v373
        %v378 = vmul.f32 %v347, %v356
        %vm379 = vcmp.eq.s32.totalorder %v321, 3
        %v380 = vsel %vm379, 1.0, 0.0
        %v381 = vmul.f32 %v378, %v380
        %v382 = vadd.f32 %v317, %v381
        %v383 = vadd.f32 %v318, %v378
        %v384 = vadd.f32 %v319, %v380
        %s385 = scalar_lea.vmem %s211, 16 [#allocation5]
        %v386 = vld [vmem:[%s385] sm:$0xff]
        %s387 = scalar_lea.vmem %s202, 16 [#allocation2]
        %v388 = vld [vmem:[%s387] sm:$0xff]
        %s389 = sadd.s32 16, 64
        %s390 = scalar_lea.vmem %s202, %s389 [#allocation2]
        %v391 = vld [vmem:[%s390] sm:$0xff]
        %s392 = sadd.s32 16, 128
        %s393 = scalar_lea.vmem %s202, %s392 [#allocation2]
        %v394 = vld [vmem:[%s393] sm:$0xff]
        %s395 = sadd.s32 16, 192
        %s396 = scalar_lea.vmem %s202, %s395 [#allocation2]
        %v397 = vld [vmem:[%s396] sm:$0xff]
        %v398 = vmax.f32 %v388, %v391
        %v399 = vmax.f32 %v398, %v394
        %v400 = vmax.f32 %v399, %v397
        %v401 = vsub.f32 %v388, %v400
        %v402 = vmul.f32 %v401, 1.442695
        %v403 = vpow.pop %v402
        %v404 = vsub.f32 %v391, %v400
        %v405 = vmul.f32 %v404, 1.442695
        %v406 = vpow.pop %v405
        %v407 = vsub.f32 %v394, %v400
        %v408 = vmul.f32 %v407, 1.442695
        %v409 = vpow.pop %v408
        %v410 = vsub.f32 %v397, %v400
        %v411 = vmul.f32 %v410, 1.442695
        %v412 = vpow.pop %v411
        %v413 = vadd.f32 %v403, %v406
        %v414 = vadd.f32 %v413, %v409
        %v415 = vadd.f32 %v414, %v412
        %v416 = vrcp.pop %v415
        %v417 = vmul.f32 %v415, %v416
        %v418 = vsub.f32 2.0, %v417
        %v419 = vmul.f32 %v416, %v418
        %vm420 = vcmp.ge.s32.totalorder %v386, 0
        %v421 = vsel %vm420, %v419, 0.0
        %v422 = vmul.f32 %v403, %v421
        %vm423 = vcmp.eq.s32.totalorder %v386, 0
        %v424 = vsel %vm423, 1.0, 0.0
        %v425 = vmul.f32 %v422, %v424
        %v426 = vadd.f32 %v361, %v425
        %v427 = vadd.f32 %v362, %v422
        %v428 = vadd.f32 %v363, %v424
        %v429 = vmul.f32 %v406, %v421
        %vm430 = vcmp.eq.s32.totalorder %v386, 1
        %v431 = vsel %vm430, 1.0, 0.0
        %v432 = vmul.f32 %v429, %v431
        %v433 = vadd.f32 %v368, %v432
        %v434 = vadd.f32 %v369, %v429
        %v435 = vadd.f32 %v370, %v431
        %v436 = vmul.f32 %v409, %v421
        %vm437 = vcmp.eq.s32.totalorder %v386, 2
        %v438 = vsel %vm437, 1.0, 0.0
        %v439 = vmul.f32 %v436, %v438
        %v440 = vadd.f32 %v375, %v439
        %v441 = vadd.f32 %v376, %v436
        %v442 = vadd.f32 %v377, %v438
        %v443 = vmul.f32 %v412, %v421
        %vm444 = vcmp.eq.s32.totalorder %v386, 3
        %v445 = vsel %vm444, 1.0, 0.0
        %v446 = vmul.f32 %v443, %v445
        %v447 = vadd.f32 %v382, %v446
        %v448 = vadd.f32 %v383, %v443
        %v449 = vadd.f32 %v384, %v445
        %s450 = scalar_lea.vmem %s211, 24 [#allocation5]
        %v451 = vld [vmem:[%s450] sm:$0xff]
        %s452 = scalar_lea.vmem %s202, 24 [#allocation2]
        %v453 = vld [vmem:[%s452] sm:$0xff]
        %s454 = sadd.s32 24, 64
        %s455 = scalar_lea.vmem %s202, %s454 [#allocation2]
        %v456 = vld [vmem:[%s455] sm:$0xff]
        %s457 = sadd.s32 24, 128
        %s458 = scalar_lea.vmem %s202, %s457 [#allocation2]
        %v459 = vld [vmem:[%s458] sm:$0xff]
        %s460 = sadd.s32 24, 192
        %s461 = scalar_lea.vmem %s202, %s460 [#allocation2]
        %v462 = vld [vmem:[%s461] sm:$0xff]
        %v463 = vmax.f32 %v453, %v456
        %v464 = vmax.f32 %v463, %v459
        %v465 = vmax.f32 %v464, %v462
        %v466 = vsub.f32 %v453, %v465
        %v467 = vmul.f32 %v466, 1.442695
        %v468 = vpow.pop %v467
        %v469 = vsub.f32 %v456, %v465
        %v470 = vmul.f32 %v469, 1.442695
        %v471 = vpow.pop %v470
        %v472 = vsub.f32 %v459, %v465
        %v473 = vmul.f32 %v472, 1.442695
        %v474 = vpow.pop %v473
        %v475 = vsub.f32 %v462, %v465
        %v476 = vmul.f32 %v475, 1.442695
        %v477 = vpow.pop %v476
        %v478 = vadd.f32 %v468, %v471
        %v479 = vadd.f32 %v478, %v474
        %v480 = vadd.f32 %v479, %v477
        %v481 = vrcp.pop %v480
        %v482 = vmul.f32 %v480, %v481
        %v483 = vsub.f32 2.0, %v482
        %v484 = vmul.f32 %v481, %v483
        %vm485 = vcmp.ge.s32.totalorder %v451, 0
        %v486 = vsel %vm485, %v484, 0.0
        %v487 = vmul.f32 %v468, %v486
        %vm488 = vcmp.eq.s32.totalorder %v451, 0
        %v489 = vsel %vm488, 1.0, 0.0
        %v490 = vmul.f32 %v487, %v489
        %v491 = vadd.f32 %v426, %v490
        %v492 = vadd.f32 %v427, %v487
        %v493 = vadd.f32 %v428, %v489
        %v494 = vmul.f32 %v471, %v486
        %vm495 = vcmp.eq.s32.totalorder %v451, 1
        %v496 = vsel %vm495, 1.0, 0.0
        %v497 = vmul.f32 %v494, %v496
        %v498 = vadd.f32 %v433, %v497
        %v499 = vadd.f32 %v434, %v494
        %v500 = vadd.f32 %v435, %v496
        %v501 = vmul.f32 %v474, %v486
        %vm502 = vcmp.eq.s32.totalorder %v451, 2
        %v503 = vsel %vm502, 1.0, 0.0
        %v504 = vmul.f32 %v501, %v503
        %v505 = vadd.f32 %v440, %v504
        %v506 = vadd.f32 %v441, %v501
        %v507 = vadd.f32 %v442, %v503
        %v508 = vmul.f32 %v477, %v486
        %vm509 = vcmp.eq.s32.totalorder %v451, 3
        %v510 = vsel %vm509, 1.0, 0.0
        %v511 = vmul.f32 %v508, %v510
        %v512 = vadd.f32 %v447, %v511
        %v513 = vadd.f32 %v448, %v508
        %v514 = vadd.f32 %v449, %v510
        %s515 = scalar_lea.vmem %s211, 32 [#allocation5]
        %v516 = vld [vmem:[%s515] sm:$0xff]
        %s517 = scalar_lea.vmem %s202, 32 [#allocation2]
        %v518 = vld [vmem:[%s517] sm:$0xff]
        %s519 = sadd.s32 32, 64
        %s520 = scalar_lea.vmem %s202, %s519 [#allocation2]
        %v521 = vld [vmem:[%s520] sm:$0xff]
        %s522 = sadd.s32 32, 128
        %s523 = scalar_lea.vmem %s202, %s522 [#allocation2]
        %v524 = vld [vmem:[%s523] sm:$0xff]
        %s525 = sadd.s32 32, 192
        %s526 = scalar_lea.vmem %s202, %s525 [#allocation2]
        %v527 = vld [vmem:[%s526] sm:$0xff]
        %v528 = vmax.f32 %v518, %v521
        %v529 = vmax.f32 %v528, %v524
        %v530 = vmax.f32 %v529, %v527
        %v531 = vsub.f32 %v518, %v530
        %v532 = vmul.f32 %v531, 1.442695
        %v533 = vpow.pop %v532
        %v534 = vsub.f32 %v521, %v530
        %v535 = vmul.f32 %v534, 1.442695
        %v536 = vpow.pop %v535
        %v537 = vsub.f32 %v524, %v530
        %v538 = vmul.f32 %v537, 1.442695
        %v539 = vpow.pop %v538
        %v540 = vsub.f32 %v527, %v530
        %v541 = vmul.f32 %v540, 1.442695
        %v542 = vpow.pop %v541
        %v543 = vadd.f32 %v533, %v536
        %v544 = vadd.f32 %v543, %v539
        %v545 = vadd.f32 %v544, %v542
        %v546 = vrcp.pop %v545
        %v547 = vmul.f32 %v545, %v546
        %v548 = vsub.f32 2.0, %v547
        %v549 = vmul.f32 %v546, %v548
        %vm550 = vcmp.ge.s32.totalorder %v516, 0
        %v551 = vsel %vm550, %v549, 0.0
        %v552 = vmul.f32 %v533, %v551
        %vm553 = vcmp.eq.s32.totalorder %v516, 0
        %v554 = vsel %vm553, 1.0, 0.0
        %v555 = vmul.f32 %v552, %v554
        %v556 = vadd.f32 %v491, %v555
        %v557 = vadd.f32 %v492, %v552
        %v558 = vadd.f32 %v493, %v554
        %v559 = vmul.f32 %v536, %v551
        %vm560 = vcmp.eq.s32.totalorder %v516, 1
        %v561 = vsel %vm560, 1.0, 0.0
        %v562 = vmul.f32 %v559, %v561
        %v563 = vadd.f32 %v498, %v562
        %v564 = vadd.f32 %v499, %v559
        %v565 = vadd.f32 %v500, %v561
        %v566 = vmul.f32 %v539, %v551
        %vm567 = vcmp.eq.s32.totalorder %v516, 2
        %v568 = vsel %vm567, 1.0, 0.0
        %v569 = vmul.f32 %v566, %v568
        %v570 = vadd.f32 %v505, %v569
        %v571 = vadd.f32 %v506, %v566
        %v572 = vadd.f32 %v507, %v568
        %v573 = vmul.f32 %v542, %v551
        %vm574 = vcmp.eq.s32.totalorder %v516, 3
        %v575 = vsel %vm574, 1.0, 0.0
        %v576 = vmul.f32 %v573, %v575
        %v577 = vadd.f32 %v512, %v576
        %v578 = vadd.f32 %v513, %v573
        %v579 = vadd.f32 %v514, %v575
        %s580 = scalar_lea.vmem %s211, 40 [#allocation5]
        %v581 = vld [vmem:[%s580] sm:$0xff]
        %s582 = scalar_lea.vmem %s202, 40 [#allocation2]
        %v583 = vld [vmem:[%s582] sm:$0xff]
        %s584 = sadd.s32 40, 64
        %s585 = scalar_lea.vmem %s202, %s584 [#allocation2]
        %v586 = vld [vmem:[%s585] sm:$0xff]
        %s587 = sadd.s32 40, 128
        %s588 = scalar_lea.vmem %s202, %s587 [#allocation2]
        %v589 = vld [vmem:[%s588] sm:$0xff]
        %s590 = sadd.s32 40, 192
        %s591 = scalar_lea.vmem %s202, %s590 [#allocation2]
        %v592 = vld [vmem:[%s591] sm:$0xff]
        %v593 = vmax.f32 %v583, %v586
        %v594 = vmax.f32 %v593, %v589
        %v595 = vmax.f32 %v594, %v592
        %v596 = vsub.f32 %v583, %v595
        %v597 = vmul.f32 %v596, 1.442695
        %v598 = vpow.pop %v597
        %v599 = vsub.f32 %v586, %v595
        %v600 = vmul.f32 %v599, 1.442695
        %v601 = vpow.pop %v600
        %v602 = vsub.f32 %v589, %v595
        %v603 = vmul.f32 %v602, 1.442695
        %v604 = vpow.pop %v603
        %v605 = vsub.f32 %v592, %v595
        %v606 = vmul.f32 %v605, 1.442695
        %v607 = vpow.pop %v606
        %v608 = vadd.f32 %v598, %v601
        %v609 = vadd.f32 %v608, %v604
        %v610 = vadd.f32 %v609, %v607
        %v611 = vrcp.pop %v610
        %v612 = vmul.f32 %v610, %v611
        %v613 = vsub.f32 2.0, %v612
        %v614 = vmul.f32 %v611, %v613
        %vm615 = vcmp.ge.s32.totalorder %v581, 0
        %v616 = vsel %vm615, %v614, 0.0
        %v617 = vmul.f32 %v598, %v616
        %vm618 = vcmp.eq.s32.totalorder %v581, 0
        %v619 = vsel %vm618, 1.0, 0.0
        %v620 = vmul.f32 %v617, %v619
        %v621 = vadd.f32 %v556, %v620
        %v622 = vadd.f32 %v557, %v617
        %v623 = vadd.f32 %v558, %v619
        %v624 = vmul.f32 %v601, %v616
        %vm625 = vcmp.eq.s32.totalorder %v581, 1
        %v626 = vsel %vm625, 1.0, 0.0
        %v627 = vmul.f32 %v624, %v626
        %v628 = vadd.f32 %v563, %v627
        %v629 = vadd.f32 %v564, %v624
        %v630 = vadd.f32 %v565, %v626
        %v631 = vmul.f32 %v604, %v616
        %vm632 = vcmp.eq.s32.totalorder %v581, 2
        %v633 = vsel %vm632, 1.0, 0.0
        %v634 = vmul.f32 %v631, %v633
        %v635 = vadd.f32 %v570, %v634
        %v636 = vadd.f32 %v571, %v631
        %v637 = vadd.f32 %v572, %v633
        %v638 = vmul.f32 %v607, %v616
        %vm639 = vcmp.eq.s32.totalorder %v581, 3
        %v640 = vsel %vm639, 1.0, 0.0
        %v641 = vmul.f32 %v638, %v640
        %v642 = vadd.f32 %v577, %v641
        %v643 = vadd.f32 %v578, %v638
        %v644 = vadd.f32 %v579, %v640
        %s645 = scalar_lea.vmem %s211, 48 [#allocation5]
        %v646 = vld [vmem:[%s645] sm:$0xff]
        %s647 = scalar_lea.vmem %s202, 48 [#allocation2]
        %v648 = vld [vmem:[%s647] sm:$0xff]
        %s649 = sadd.s32 48, 64
        %s650 = scalar_lea.vmem %s202, %s649 [#allocation2]
        %v651 = vld [vmem:[%s650] sm:$0xff]
        %s652 = sadd.s32 48, 128
        %s653 = scalar_lea.vmem %s202, %s652 [#allocation2]
        %v654 = vld [vmem:[%s653] sm:$0xff]
        %s655 = sadd.s32 48, 192
        %s656 = scalar_lea.vmem %s202, %s655 [#allocation2]
        %v657 = vld [vmem:[%s656] sm:$0xff]
        %v658 = vmax.f32 %v648, %v651
        %v659 = vmax.f32 %v658, %v654
        %v660 = vmax.f32 %v659, %v657
        %v661 = vsub.f32 %v648, %v660
        %v662 = vmul.f32 %v661, 1.442695
        %v663 = vpow.pop %v662
        %v664 = vsub.f32 %v651, %v660
        %v665 = vmul.f32 %v664, 1.442695
        %v666 = vpow.pop %v665
        %v667 = vsub.f32 %v654, %v660
        %v668 = vmul.f32 %v667, 1.442695
        %v669 = vpow.pop %v668
        %v670 = vsub.f32 %v657, %v660
        %v671 = vmul.f32 %v670, 1.442695
        %v672 = vpow.pop %v671
        %v673 = vadd.f32 %v663, %v666
        %v674 = vadd.f32 %v673, %v669
        %v675 = vadd.f32 %v674, %v672
        %v676 = vrcp.pop %v675
        %v677 = vmul.f32 %v675, %v676
        %v678 = vsub.f32 2.0, %v677
        %v679 = vmul.f32 %v676, %v678
        %vm680 = vcmp.ge.s32.totalorder %v646, 0
        %v681 = vsel %vm680, %v679, 0.0
        %v682 = vmul.f32 %v663, %v681
        %vm683 = vcmp.eq.s32.totalorder %v646, 0
        %v684 = vsel %vm683, 1.0, 0.0
        %v685 = vmul.f32 %v682, %v684
        %v686 = vadd.f32 %v621, %v685
        %v687 = vadd.f32 %v622, %v682
        %v688 = vadd.f32 %v623, %v684
        %v689 = vmul.f32 %v666, %v681
        %vm690 = vcmp.eq.s32.totalorder %v646, 1
        %v691 = vsel %vm690, 1.0, 0.0
        %v692 = vmul.f32 %v689, %v691
        %v693 = vadd.f32 %v628, %v692
        %v694 = vadd.f32 %v629, %v689
        %v695 = vadd.f32 %v630, %v691
        %v696 = vmul.f32 %v669, %v681
        %vm697 = vcmp.eq.s32.totalorder %v646, 2
        %v698 = vsel %vm697, 1.0, 0.0
        %v699 = vmul.f32 %v696, %v698
        %v700 = vadd.f32 %v635, %v699
        %v701 = vadd.f32 %v636, %v696
        %v702 = vadd.f32 %v637, %v698
        %v703 = vmul.f32 %v672, %v681
        %vm704 = vcmp.eq.s32.totalorder %v646, 3
        %v705 = vsel %vm704, 1.0, 0.0
        %v706 = vmul.f32 %v703, %v705
        %v707 = vadd.f32 %v642, %v706
        %v708 = vadd.f32 %v643, %v703
        %v709 = vadd.f32 %v644, %v705
        %s710 = scalar_lea.vmem %s211, 56 [#allocation5]
        %v711 = vld [vmem:[%s710] sm:$0xff]
        %s712 = scalar_lea.vmem %s202, 56 [#allocation2]
        %v713 = vld [vmem:[%s712] sm:$0xff]
        %s714 = sadd.s32 56, 64
        %s715 = scalar_lea.vmem %s202, %s714 [#allocation2]
        %v716 = vld [vmem:[%s715] sm:$0xff]
        %s717 = sadd.s32 56, 128
        %s718 = scalar_lea.vmem %s202, %s717 [#allocation2]
        %v719 = vld [vmem:[%s718] sm:$0xff]
        %s720 = sadd.s32 56, 192
        %s721 = scalar_lea.vmem %s202, %s720 [#allocation2]
        %v722 = vld [vmem:[%s721] sm:$0xff]
        %v723 = vmax.f32 %v713, %v716
        %v724 = vmax.f32 %v723, %v719
        %v725 = vmax.f32 %v724, %v722
        %v726 = vsub.f32 %v713, %v725
        %v727 = vmul.f32 %v726, 1.442695
        %v728 = vpow.pop %v727
        %v729 = vsub.f32 %v716, %v725
        %v730 = vmul.f32 %v729, 1.442695
        %v731 = vpow.pop %v730
        %v732 = vsub.f32 %v719, %v725
        %v733 = vmul.f32 %v732, 1.442695
        %v734 = vpow.pop %v733
        %v735 = vsub.f32 %v722, %v725
        %v736 = vmul.f32 %v735, 1.442695
        %v737 = vpow.pop %v736
        %v738 = vadd.f32 %v728, %v731
        %v739 = vadd.f32 %v738, %v734
        %v740 = vadd.f32 %v739, %v737
        %v741 = vrcp.pop %v740
        %v742 = vmul.f32 %v740, %v741
        %v743 = vsub.f32 2.0, %v742
        %v744 = vmul.f32 %v741, %v743
        %vm745 = vcmp.ge.s32.totalorder %v711, 0
        %v746 = vsel %vm745, %v744, 0.0
        %v747 = vmul.f32 %v728, %v746
        %vm748 = vcmp.eq.s32.totalorder %v711, 0
        %v749 = vsel %vm748, 1.0, 0.0
        %v750 = vmul.f32 %v747, %v749
        %v751 = vadd.f32 %v686, %v750
        %v752 = vadd.f32 %v687, %v747
        %v753 = vadd.f32 %v688, %v749
        %v754 = vmul.f32 %v731, %v746
        %vm755 = vcmp.eq.s32.totalorder %v711, 1
        %v756 = vsel %vm755, 1.0, 0.0
        %v757 = vmul.f32 %v754, %v756
        %v758 = vadd.f32 %v693, %v757
        %v759 = vadd.f32 %v694, %v754
        %v760 = vadd.f32 %v695, %v756
        %v761 = vmul.f32 %v734, %v746
        %vm762 = vcmp.eq.s32.totalorder %v711, 2
        %v763 = vsel %vm762, 1.0, 0.0
        %v764 = vmul.f32 %v761, %v763
        %v765 = vadd.f32 %v700, %v764
        %v766 = vadd.f32 %v701, %v761
        %v767 = vadd.f32 %v702, %v763
        %v768 = vmul.f32 %v737, %v746
        %vm769 = vcmp.eq.s32.totalorder %v711, 3
        %v770 = vsel %vm769, 1.0, 0.0
        %v771 = vmul.f32 %v768, %v770
        %v772 = vadd.f32 %v707, %v771
        %v773 = vadd.f32 %v708, %v768
        %v774 = vadd.f32 %v709, %v770
        %v775 = vld [vmem:[%s236] sm:$0xff]
        %v776 = vadd.f32 %v775, %v751
        %777 = vst [vmem:[%s236] sm:$0xff] %v776
        %v778 = vld [vmem:[%s236 + $0x8] sm:$0xff]
        %v779 = vadd.f32 %v778, %v758
        %780 = vst [vmem:[%s236 + $0x8] sm:$0xff] %v779
        %v781 = vld [vmem:[%s236 + $0x10] sm:$0xff]
        %v782 = vadd.f32 %v781, %v765
        %783 = vst [vmem:[%s236 + $0x10] sm:$0xff] %v782
        %v784 = vld [vmem:[%s236 + $0x18] sm:$0xff]
        %v785 = vadd.f32 %v784, %v772
        %786 = vst [vmem:[%s236 + $0x18] sm:$0xff] %v785
        %v787 = vld [vmem:[%s236 + $0x20] sm:$0xff]
        %v788 = vadd.f32 %v787, %v752
        %789 = vst [vmem:[%s236 + $0x20] sm:$0xff] %v788
        %v790 = vld [vmem:[%s236 + $0x28] sm:$0xff]
        %v791 = vadd.f32 %v790, %v759
        %792 = vst [vmem:[%s236 + $0x28] sm:$0xff] %v791
        %v793 = vld [vmem:[%s236 + $0x30] sm:$0xff]
        %v794 = vadd.f32 %v793, %v766
        %795 = vst [vmem:[%s236 + $0x30] sm:$0xff] %v794
        %v796 = vld [vmem:[%s236 + $0x38] sm:$0xff]
        %v797 = vadd.f32 %v796, %v773
        %798 = vst [vmem:[%s236 + $0x38] sm:$0xff] %v797
        %v799 = vld [vmem:[%s236 + $0x40] sm:$0xff]
        %v800 = vadd.f32 %v799, %v753
        %801 = vst [vmem:[%s236 + $0x40] sm:$0xff] %v800
        %v802 = vld [vmem:[%s236 + $0x48] sm:$0xff]
        %v803 = vadd.f32 %v802, %v760
        %804 = vst [vmem:[%s236 + $0x48] sm:$0xff] %v803
        %v805 = vld [vmem:[%s236 + $0x50] sm:$0xff]
        %v806 = vadd.f32 %v805, %v767
        %807 = vst [vmem:[%s236 + $0x50] sm:$0xff] %v806
        %v808 = vld [vmem:[%s236 + $0x58] sm:$0xff]
        %v809 = vadd.f32 %v808, %v774
        %810 = vst [vmem:[%s236 + $0x58] sm:$0xff] %v809
        %s811 = sand.u32 %s111, 1
        %s812 = scalar_lea.sflag [#allocation4], %s811
        %s813 = sand.u32 %s111, 1
        %s814 = smul.addr %s813, 96
        %s815 = scalar_lea.vmem [#allocation7], %s814
        // Predicated region
        $region41: #{tpu_custom_call.1} parent=27 // pred_check
          %p816 = pneg %p121
        $region42: #{tpu_custom_call.1} parent=27 // pred_check_branch
          %818 = sbr.rel (%p816) target = $region44
        $region43: #{tpu_custom_call.1} parent=27 // pred_region
          %s820 = ssub.s32 1536, 1536
          %821 = vsyncadd %s812, %s820
          %s822 = smul.addr %s28, 12
          %s823 = smul.addr %s27, 24
          %s824 = sadd.s32 %s822, %s823
          %s825 = smul.addr %s824, 128
          %s826 = scalar_lea.hbm %s2, %s825
          %s827 = sshll.u32 %s815, 4
          %s828 = int_to_ptr.vmem [resolvable:$true] %s827
          %833 = dma.vmem_to_hbm [thread:$0]  %s828, 1536, %s826, %s812, 128, 128, 8
        $region44: #{tpu_custom_call.1} parent=27 // pred_fallthru
          _
      $region28: #{tpu_custom_call.1} parent=5 // pred_fallthru
        _
      %p834 = scmp.le.s32.totalorder 2, %s17
      // Predicated region
      $region45: #{tpu_custom_call.1} parent=5 // pred_check
        %p835 = pneg %p834
      $region46: #{tpu_custom_call.1} parent=5 // pred_check_branch
        %837 = sbr.rel (%p835) target = $region48
      $region47: #{tpu_custom_call.1} parent=5 // pred_region
        %s838 = ssub.s32 %s17, 2
        // Predicated region
        $region49: #{tpu_custom_call.1} parent=47 // pred_check
          %p839 = pneg %p127
        $region50: #{tpu_custom_call.1} parent=47 // pred_check_branch
          %841 = sbr.rel (%p839) target = $region52
        $region51: #{tpu_custom_call.1} parent=47 // pred_region
          %s842 = sand.u32 %s112, 1
          %s843 = scalar_lea.sflag [#allocation4], %s842
          %s844 = sand.u32 %s112, 1
          %s845 = smul.addr %s844, 96
          %s846 = scalar_lea.vmem [#allocation7], %s845
          %847 = dma.done %s843, 1536
        $region52: #{tpu_custom_call.1} parent=47 // pred_fallthru
          _
      $region48: #{tpu_custom_call.1} parent=5 // pred_fallthru
        _
    $region6: #{tpu_custom_call.1} parent=1 // loop_footer
      %s21 = sadd.s32 1, %s17
    $region7: #{tpu_custom_call.1} parent=1 // loop_footer_branch
      %16 = sbr.rel target = $region3
    $region8: #{tpu_custom_call.1} parent=1 // loop_exit
      _
    %848 = vsyncpa [#allocation3], 1
    %s849 = scalar_lea.sflag [#allocation3], 1
    %850 = vsyncpa %s849, 1
    %851 = vsyncpa [#allocation6], 1
    %s852 = scalar_lea.sflag [#allocation6], 1
    %853 = vsyncpa %s852, 1
    %854 = vsyncpa [#allocation4], 1
    %s855 = scalar_lea.sflag [#allocation4], 1
    %856 = vsyncpa %s855, 1

</llo_original>
